<compile_context>
chip_gen: v5e
topology: v5e:2x2
jax: 0.10.0
libtpu: 0.0.40
codegen_flags: <defaults>
</compile_context>

<pallas_src>
import math
from functools import partial

import jax
import jax.numpy as jnp
import numpy as np
from jax.experimental import pallas as pl
from jax.experimental.pallas import tpu as pltpu

# ----------------------- small BERT-like config -----------------------
VOCAB = 100
MAX_POS = 32
HIDDEN = 32
N_HEADS = 2
HEAD_DIM = HIDDEN // N_HEADS
FFN = 4 * HIDDEN
N_LAYERS = 2
N_TRAITS = 7
OUT_SIZE = 3
LN_EPS = 1e-12
SLAB_W = 128                      # lane width of the packed weight slab
NEG_INF = -1e9


# ---------------- packed weight-slab layout (static, Python) ----------------
def _build_layout():
    mat, vec = {}, {}
    cur = 0

    def add_mat(name, nrows):
        nonlocal cur
        cur = -(-cur // 8) * 8            # 8-sublane align matrix starts
        mat[name] = cur
        cur += nrows

    def add_vec(name):                    # 1-row bias / LN vectors, packed densely
        nonlocal cur
        vec[name] = cur
        cur += 1

    add_mat("word_emb", VOCAB)            # rows gathered dynamically by token id
    add_mat("pos_type", MAX_POS)          # pos_emb + type_emb[0] pre-summed
    for l in range(N_LAYERS):
        for h in range(N_HEADS):
            add_mat(f"wq_{l}_{h}", HIDDEN)
            add_mat(f"wk_{l}_{h}", HIDDEN)
            add_mat(f"wv_{l}_{h}", HIDDEN)
            add_mat(f"wo_{l}_{h}", HEAD_DIM)
        add_mat(f"w1_{l}", HIDDEN)
        add_mat(f"w2_{l}", FFN)
    add_mat("reg_wh", HIDDEN)
    add_mat("reg_wt", N_TRAITS)

    add_vec("emb_ln_g"); add_vec("emb_ln_b")
    for l in range(N_LAYERS):
        for h in range(N_HEADS):
            add_vec(f"bq_{l}_{h}"); add_vec(f"bk_{l}_{h}"); add_vec(f"bv_{l}_{h}")
        add_vec(f"bo_{l}")
        add_vec(f"ln1_g_{l}"); add_vec(f"ln1_b_{l}")
        add_vec(f"b1_{l}"); add_vec(f"b2_{l}")
        add_vec(f"ln2_g_{l}"); add_vec(f"ln2_b_{l}")
    add_vec("reg_b")

    total = -(-cur // 8) * 8
    return mat, vec, total


MAT_ROW, VEC_ROW, SLAB_ROWS = _build_layout()


# ------------------------------ kernel ---------------------------------
def _layernorm(x, g, b):
    mean = jnp.mean(x, axis=-1, keepdims=True)
    var = jnp.mean((x - mean) ** 2, axis=-1, keepdims=True)
    return (x - mean) * jax.lax.rsqrt(var + LN_EPS) * g + b


def _fused_forward_kernel(ids_ref,                       # SMEM, scalar-prefetched
                          mask_ref, traits_ref, w_ref,   # VMEM inputs
                          out_ref,                       # VMEM output (B, OUT_SIZE)
                          x_ref, bias_ref, cls_ref,      # VMEM scratch
                          *, batch, seq):
    f32 = jnp.float32
    bs = batch * seq
    scale = 1.0 / math.sqrt(HEAD_DIM)

    def mat(name, nrows, ncols):
        r = MAT_ROW[name]
        return w_ref[r:r + nrows, 0:ncols]

    def vec(name, ncols):
        r = VEC_ROW[name]
        return w_ref[r:r + 1, 0:ncols]

    # ---- in-kernel embedding: gather word rows by scalar-prefetched ids, add pos+type ----
    # TODO(synk): positions are 0..S-1 and token_type_ids==0, matching the reference's
    # default BERT call (no explicit position/token_type ids).
    for b in range(batch):
        for s in range(seq):
            tok = ids_ref[b, s]
            word = w_ref[pl.ds(MAT_ROW["word_emb"] + tok, 1), 0:HIDDEN]
            r = MAT_ROW["pos_type"] + s
            x_ref[b * seq + s:b * seq + s + 1, :] = word + w_ref[r:r + 1, 0:HIDDEN]

    x = _layernorm(x_ref[...], vec("emb_ln_g", HIDDEN), vec("emb_ln_b", HIDDEN))

    # ---- block-diagonal attention bias, built in-kernel from the mask ----
    # bias[i, j] = (mask[b, j%S] - 1) * 1e9 within batch block b, else -1e9.
    bias_ref[...] = jnp.full((bs, bs), NEG_INF, f32)
    for b in range(batch):
        blk = jnp.broadcast_to((mask_ref[b:b + 1, :] - 1.0) * 1e9, (seq, seq))
        bias_ref[b * seq:(b + 1) * seq, b * seq:(b + 1) * seq] = blk
    bias = bias_ref[...]

    # ---- transformer layers (statically unrolled) ----
    for l in range(N_LAYERS):
        attn = jnp.zeros((bs, HIDDEN), f32)
        for h in range(N_HEADS):
            # Per-head projections from per-head weight slices (all lane offset 0).
            q = jnp.dot(x, mat(f"wq_{l}_{h}", HIDDEN, HEAD_DIM),
                        preferred_element_type=f32) + vec(f"bq_{l}_{h}", HEAD_DIM)
            k = jnp.dot(x, mat(f"wk_{l}_{h}", HIDDEN, HEAD_DIM),
                        preferred_element_type=f32) + vec(f"bk_{l}_{h}", HEAD_DIM)
            v = jnp.dot(x, mat(f"wv_{l}_{h}", HIDDEN, HEAD_DIM),
                        preferred_element_type=f32) + vec(f"bv_{l}_{h}", HEAD_DIM)
            # Block-diagonal attention over all B*S rows: one QK^T, one P@V per head.
            s = jax.lax.dot_general(q, k, (((1,), (1,)), ((), ())),
                                    preferred_element_type=f32) * scale + bias
            s = s - jnp.max(s, axis=-1, keepdims=True)
            p = jnp.exp(s)
            p = p / jnp.sum(p, axis=-1, keepdims=True)            # exact softmax
            ctx = jnp.dot(p, v, preferred_element_type=f32)        # (B*S, HEAD_DIM)
            # Head merge folded into the output projection: sum_h ctx_h @ Wo_h.
            attn = attn + jnp.dot(ctx, mat(f"wo_{l}_{h}", HEAD_DIM, HIDDEN),
                                  preferred_element_type=f32)
        attn = attn + vec(f"bo_{l}", HIDDEN)
        x = _layernorm(attn + x, vec(f"ln1_g_{l}", HIDDEN), vec(f"ln1_b_{l}", HIDDEN))

        hdn = jnp.dot(x, mat(f"w1_{l}", HIDDEN, FFN),
                      preferred_element_type=f32) + vec(f"b1_{l}", FFN)
        # TODO(synk): HF BERT default is exact (erf) GELU; tanh approximation kept
        # for portable Mosaic lowering — small numeric deviation over 2 layers.
        hdn = jax.nn.gelu(hdn, approximate=True)
        ffn = jnp.dot(hdn, mat(f"w2_{l}", FFN, HIDDEN),
                      preferred_element_type=f32) + vec(f"b2_{l}", HIDDEN)
        x = _layernorm(ffn + x, vec(f"ln2_g_{l}", HIDDEN), vec(f"ln2_b_{l}", HIDDEN))

    # ---- CLS rows -> tiny VMEM scratch (no concatenate chain) ----
    for b in range(batch):
        cls_ref[b:b + 1, :] = x[b * seq:b * seq + 1, :]

    # ---- regressor: concat([cls, traits]) @ W + b, written directly as (B, OUT_SIZE) ----
    y = jnp.dot(cls_ref[...], mat("reg_wh", HIDDEN, OUT_SIZE), preferred_element_type=f32)
    y = y + jnp.dot(traits_ref[...], mat("reg_wt", N_TRAITS, OUT_SIZE),
                    preferred_element_type=f32)
    out_ref[...] = y + vec("reg_b", OUT_SIZE)


# --------------------------- parameters -------------------------------
def init_params(key):
    keys = iter(jax.random.split(key, 64))

    def nrm(shape, scale=0.02):
        return np.asarray(scale * jax.random.normal(next(keys), shape, dtype=jnp.float32))

    slab = np.zeros((SLAB_ROWS, SLAB_W), np.float32)

    def put_mat(name, val):
        val = np.asarray(val, np.float32)
        r = MAT_ROW[name]
        slab[r:r + val.shape[0], :val.shape[1]] = val

    def put_vec(name, val):
        val = np.asarray(val, np.float32).reshape(-1)
        slab[VEC_ROW[name], :val.shape[0]] = val

    put_mat("word_emb", nrm((VOCAB, HIDDEN)))
    pos = nrm((MAX_POS, HIDDEN))
    typ = nrm((2, HIDDEN))
    put_mat("pos_type", pos + typ[0:1])                    # token_type_ids == 0
    put_vec("emb_ln_g", np.ones(HIDDEN)); put_vec("emb_ln_b", np.zeros(HIDDEN))

    for l in range(N_LAYERS):
        wq, wk, wv = nrm((HIDDEN, HIDDEN)), nrm((HIDDEN, HIDDEN)), nrm((HIDDEN, HIDDEN))
        wo = nrm((HIDDEN, HIDDEN))
        for h in range(N_HEADS):
            c0, c1 = h * HEAD_DIM, (h + 1) * HEAD_DIM
            put_mat(f"wq_{l}_{h}", wq[:, c0:c1])
            put_mat(f"wk_{l}_{h}", wk[:, c0:c1])
            put_mat(f"wv_{l}_{h}", wv[:, c0:c1])
            put_mat(f"wo_{l}_{h}", wo[c0:c1, :])           # Wo rows owned by this head
            put_vec(f"bq_{l}_{h}", np.zeros(HEAD_DIM))
            put_vec(f"bk_{l}_{h}", np.zeros(HEAD_DIM))
            put_vec(f"bv_{l}_{h}", np.zeros(HEAD_DIM))
        put_vec(f"bo_{l}", np.zeros(HIDDEN))
        put_vec(f"ln1_g_{l}", np.ones(HIDDEN)); put_vec(f"ln1_b_{l}", np.zeros(HIDDEN))
        put_mat(f"w1_{l}", nrm((HIDDEN, FFN))); put_vec(f"b1_{l}", np.zeros(FFN))
        put_mat(f"w2_{l}", nrm((FFN, HIDDEN))); put_vec(f"b2_{l}", np.zeros(HIDDEN))
        put_vec(f"ln2_g_{l}", np.ones(HIDDEN)); put_vec(f"ln2_b_{l}", np.zeros(HIDDEN))

    # Regressor Linear(hidden + 7 -> output_size), split into CLS / traits halves.
    reg_w = nrm((HIDDEN + N_TRAITS, OUT_SIZE))
    put_mat("reg_wh", reg_w[:HIDDEN])
    put_mat("reg_wt", reg_w[HIDDEN:])
    put_vec("reg_b", nrm((OUT_SIZE,)))
    return jnp.asarray(slab)


# ----------------------------- forward --------------------------------
def bert_multi_regressor(weights, input_ids, attention_mask, audio_traits):
    B, S = input_ids.shape
    grid_spec = pltpu.PrefetchScalarGridSpec(
        num_scalar_prefetch=1,                 # input_ids -> SMEM, gathered in-kernel
        grid=(1,),
        in_specs=[
            pl.BlockSpec((B, S), lambda i, ids: (0, 0)),                # mask
            pl.BlockSpec((B, N_TRAITS), lambda i, ids: (0, 0)),         # audio traits
            pl.BlockSpec((SLAB_ROWS, SLAB_W), lambda i, ids: (0, 0)),   # packed weights
        ],
        out_specs=pl.BlockSpec((B, OUT_SIZE), lambda i, ids: (0, 0)),
        scratch_shapes=[
            pltpu.VMEM((B * S, HIDDEN), jnp.float32),    # embedding / activation buffer
            pltpu.VMEM((B * S, B * S), jnp.float32),     # block-diagonal attention bias
            pltpu.VMEM((B, HIDDEN), jnp.float32),        # CLS rows
        ],
    )
    return pl.pallas_call(
        partial(_fused_forward_kernel, batch=B, seq=S),
        grid_spec=grid_spec,
        out_shape=jax.ShapeDtypeStruct((B, OUT_SIZE), jnp.float32),
        compiler_params=pltpu.CompilerParams(dimension_semantics=("arbitrary",)),
    )(input_ids.astype(jnp.int32), attention_mask.astype(jnp.float32),
      audio_traits.astype(jnp.float32), weights)


# ------------------------------- main ----------------------------------
if __name__ == "__main__":
    B, S = 2, 8
    key = jax.random.PRNGKey(0)
    k_ids, k_traits = jax.random.split(key, 2)

    input_ids = jax.random.randint(k_ids, (B, S), 0, VOCAB, dtype=jnp.int32)
    attention_mask = jnp.ones((B, S), dtype=jnp.float32).at[1, 6:].set(0.0)
    audio_traits = jax.random.normal(k_traits, (B, N_TRAITS), dtype=jnp.float32)

    weights = init_params(jax.random.PRNGKey(42))

    fwd = jax.jit(bert_multi_regressor)
    out = jax.block_until_ready(fwd(weights, input_ids, attention_mask, audio_traits))

    # TODO(synk): the final `.to(torch.float64)` cast is done host-side; TPU has no native f64.
    result = {"logits": np.asarray(out).astype(np.float64)}
    assert result["logits"].shape == (B, OUT_SIZE)
    assert result["logits"].dtype == np.float64
    assert np.all(np.isfinite(result["logits"]))

    print("KERNEL_OK")
</pallas_src>

<mosaic_0001>
module attributes {stable_mosaic.version = 11 : i64} {
  func.func @_fused_forward_kernel(%arg0: i32, %arg1: memref<2x8xi32, #tpu.memory_space<smem>>, %arg2: memref<2x8xf32, #tpu.memory_space<vmem>>, %arg3: memref<2x7xf32, #tpu.memory_space<vmem>>, %arg4: memref<976x128xf32, #tpu.memory_space<vmem>>, %arg5: memref<2x3xf32, #tpu.memory_space<vmem>>, %arg6: memref<16x32xf32, #tpu.memory_space<vmem>>, %arg7: memref<16x16xf32, #tpu.memory_space<vmem>>, %arg8: memref<2x32xf32, #tpu.memory_space<vmem>>) attributes {dimension_semantics = [#tpu.dimension_semantics<arbitrary>], iteration_bounds = array<i64: 1>, scalar_prefetch = 1 : i64, scratch_operands = 3 : i64, tpu.core_type = #tpu.core_type<tc>, window_params = [{pipeline_mode = #tpu.pipeline_mode<synchronous>, transform_indices = @transform_0, window_bounds = array<i64: 2, 8>}, {pipeline_mode = #tpu.pipeline_mode<synchronous>, transform_indices = @transform_1, window_bounds = array<i64: 2, 7>}, {pipeline_mode = #tpu.pipeline_mode<synchronous>, transform_indices = @transform_2, window_bounds = array<i64: 976, 128>}, {pipeline_mode = #tpu.pipeline_mode<synchronous>, transform_indices = @transform_3, window_bounds = array<i64: 2, 3>}]} {
    %c0 = arith.constant 0 : index
    %c0_0 = arith.constant 0 : index
    %0 = memref.load %arg1[%c0, %c0_0] : memref<2x8xi32, #tpu.memory_space<smem>>
    %c0_i32 = arith.constant 0 : i32
    %1 = arith.addi %c0_i32, %0 : i32
    %2 = arith.index_cast %1 : i32 to index
    %c0_1 = arith.constant 0 : index
    %3 = vector.load %arg4[%2, %c0_1] : memref<976x128xf32, #tpu.memory_space<vmem>>, vector<1x32xf32>
    %c104 = arith.constant 104 : index
    %c0_2 = arith.constant 0 : index
    %4 = vector.load %arg4[%c104, %c0_2] : memref<976x128xf32, #tpu.memory_space<vmem>>, vector<1x32xf32>
    %5 = arith.addf %3, %4 : vector<1x32xf32>
    %c0_3 = arith.constant 0 : index
    %c0_4 = arith.constant 0 : index
    %6 = vector.load %arg6[%c0_3, %c0_4] : memref<16x32xf32, #tpu.memory_space<vmem>>, vector<1x32xf32>
    tpu.vector_store %arg6[%c0_3, %c0_4], %5 {strides = array<i32>} : memref<16x32xf32, #tpu.memory_space<vmem>>, vector<1x32xf32>,
    %c0_5 = arith.constant 0 : index
    %c1 = arith.constant 1 : index
    %7 = memref.load %arg1[%c0_5, %c1] : memref<2x8xi32, #tpu.memory_space<smem>>
    %c0_i32_6 = arith.constant 0 : i32
    %8 = arith.addi %c0_i32_6, %7 : i32
    %9 = arith.index_cast %8 : i32 to index
    %c0_7 = arith.constant 0 : index
    %10 = vector.load %arg4[%9, %c0_7] : memref<976x128xf32, #tpu.memory_space<vmem>>, vector<1x32xf32>
    %c105 = arith.constant 105 : index
    %c0_8 = arith.constant 0 : index
    %11 = vector.load %arg4[%c105, %c0_8] : memref<976x128xf32, #tpu.memory_space<vmem>>, vector<1x32xf32>
    %12 = arith.addf %10, %11 : vector<1x32xf32>
    %c1_9 = arith.constant 1 : index
    %c0_10 = arith.constant 0 : index
    %13 = vector.load %arg6[%c1_9, %c0_10] : memref<16x32xf32, #tpu.memory_space<vmem>>, vector<1x32xf32>
    tpu.vector_store %arg6[%c1_9, %c0_10], %12 {strides = array<i32>} : memref<16x32xf32, #tpu.memory_space<vmem>>, vector<1x32xf32>,
    %c0_11 = arith.constant 0 : index
    %c2 = arith.constant 2 : index
    %14 = memref.load %arg1[%c0_11, %c2] : memref<2x8xi32, #tpu.memory_space<smem>>
    %c0_i32_12 = arith.constant 0 : i32
    %15 = arith.addi %c0_i32_12, %14 : i32
    %16 = arith.index_cast %15 : i32 to index
    %c0_13 = arith.constant 0 : index
    %17 = vector.load %arg4[%16, %c0_13] : memref<976x128xf32, #tpu.memory_space<vmem>>, vector<1x32xf32>
    %c106 = arith.constant 106 : index
    %c0_14 = arith.constant 0 : index
    %18 = vector.load %arg4[%c106, %c0_14] : memref<976x128xf32, #tpu.memory_space<vmem>>, vector<1x32xf32>
    %19 = arith.addf %17, %18 : vector<1x32xf32>
    %c2_15 = arith.constant 2 : index
    %c0_16 = arith.constant 0 : index
    %20 = vector.load %arg6[%c2_15, %c0_16] : memref<16x32xf32, #tpu.memory_space<vmem>>, vector<1x32xf32>
    tpu.vector_store %arg6[%c2_15, %c0_16], %19 {strides = array<i32>} : memref<16x32xf32, #tpu.memory_space<vmem>>, vector<1x32xf32>,
    %c0_17 = arith.constant 0 : index
    %c3 = arith.constant 3 : index
    %21 = memref.load %arg1[%c0_17, %c3] : memref<2x8xi32, #tpu.memory_space<smem>>
    %c0_i32_18 = arith.constant 0 : i32
    %22 = arith.addi %c0_i32_18, %21 : i32
    %23 = arith.index_cast %22 : i32 to index
    %c0_19 = arith.constant 0 : index
    %24 = vector.load %arg4[%23, %c0_19] : memref<976x128xf32, #tpu.memory_space<vmem>>, vector<1x32xf32>
    %c107 = arith.constant 107 : index
    %c0_20 = arith.constant 0 : index
    %25 = vector.load %arg4[%c107, %c0_20] : memref<976x128xf32, #tpu.memory_space<vmem>>, vector<1x32xf32>
    %26 = arith.addf %24, %25 : vector<1x32xf32>
    %c3_21 = arith.constant 3 : index
    %c0_22 = arith.constant 0 : index
    %27 = vector.load %arg6[%c3_21, %c0_22] : memref<16x32xf32, #tpu.memory_space<vmem>>, vector<1x32xf32>
    tpu.vector_store %arg6[%c3_21, %c0_22], %26 {strides = array<i32>} : memref<16x32xf32, #tpu.memory_space<vmem>>, vector<1x32xf32>,
    %c0_23 = arith.constant 0 : index
    %c4 = arith.constant 4 : index
    %28 = memref.load %arg1[%c0_23, %c4] : memref<2x8xi32, #tpu.memory_space<smem>>
    %c0_i32_24 = arith.constant 0 : i32
    %29 = arith.addi %c0_i32_24, %28 : i32
    %30 = arith.index_cast %29 : i32 to index
    %c0_25 = arith.constant 0 : index
    %31 = vector.load %arg4[%30, %c0_25] : memref<976x128xf32, #tpu.memory_space<vmem>>, vector<1x32xf32>
    %c108 = arith.constant 108 : index
    %c0_26 = arith.constant 0 : index
    %32 = vector.load %arg4[%c108, %c0_26] : memref<976x128xf32, #tpu.memory_space<vmem>>, vector<1x32xf32>
    %33 = arith.addf %31, %32 : vector<1x32xf32>
    %c4_27 = arith.constant 4 : index
    %c0_28 = arith.constant 0 : index
    %34 = vector.load %arg6[%c4_27, %c0_28] : memref<16x32xf32, #tpu.memory_space<vmem>>, vector<1x32xf32>
    tpu.vector_store %arg6[%c4_27, %c0_28], %33 {strides = array<i32>} : memref<16x32xf32, #tpu.memory_space<vmem>>, vector<1x32xf32>,
    %c0_29 = arith.constant 0 : index
    %c5 = arith.constant 5 : index
    %35 = memref.load %arg1[%c0_29, %c5] : memref<2x8xi32, #tpu.memory_space<smem>>
    %c0_i32_30 = arith.constant 0 : i32
    %36 = arith.addi %c0_i32_30, %35 : i32
    %37 = arith.index_cast %36 : i32 to index
    %c0_31 = arith.constant 0 : index
    %38 = vector.load %arg4[%37, %c0_31] : memref<976x128xf32, #tpu.memory_space<vmem>>, vector<1x32xf32>
    %c109 = arith.constant 109 : index
    %c0_32 = arith.constant 0 : index
    %39 = vector.load %arg4[%c109, %c0_32] : memref<976x128xf32, #tpu.memory_space<vmem>>, vector<1x32xf32>
    %40 = arith.addf %38, %39 : vector<1x32xf32>
    %c5_33 = arith.constant 5 : index
    %c0_34 = arith.constant 0 : index
    %41 = vector.load %arg6[%c5_33, %c0_34] : memref<16x32xf32, #tpu.memory_space<vmem>>, vector<1x32xf32>
    tpu.vector_store %arg6[%c5_33, %c0_34], %40 {strides = array<i32>} : memref<16x32xf32, #tpu.memory_space<vmem>>, vector<1x32xf32>,
    %c0_35 = arith.constant 0 : index
    %c6 = arith.constant 6 : index
    %42 = memref.load %arg1[%c0_35, %c6] : memref<2x8xi32, #tpu.memory_space<smem>>
    %c0_i32_36 = arith.constant 0 : i32
    %43 = arith.addi %c0_i32_36, %42 : i32
    %44 = arith.index_cast %43 : i32 to index
    %c0_37 = arith.constant 0 : index
    %45 = vector.load %arg4[%44, %c0_37] : memref<976x128xf32, #tpu.memory_space<vmem>>, vector<1x32xf32>
    %c110 = arith.constant 110 : index
    %c0_38 = arith.constant 0 : index
    %46 = vector.load %arg4[%c110, %c0_38] : memref<976x128xf32, #tpu.memory_space<vmem>>, vector<1x32xf32>
    %47 = arith.addf %45, %46 : vector<1x32xf32>
    %c6_39 = arith.constant 6 : index
    %c0_40 = arith.constant 0 : index
    %48 = vector.load %arg6[%c6_39, %c0_40] : memref<16x32xf32, #tpu.memory_space<vmem>>, vector<1x32xf32>
    tpu.vector_store %arg6[%c6_39, %c0_40], %47 {strides = array<i32>} : memref<16x32xf32, #tpu.memory_space<vmem>>, vector<1x32xf32>,
    %c0_41 = arith.constant 0 : index
    %c7 = arith.constant 7 : index
    %49 = memref.load %arg1[%c0_41, %c7] : memref<2x8xi32, #tpu.memory_space<smem>>
    %c0_i32_42 = arith.constant 0 : i32
    %50 = arith.addi %c0_i32_42, %49 : i32
    %51 = arith.index_cast %50 : i32 to index
    %c0_43 = arith.constant 0 : index
    %52 = vector.load %arg4[%51, %c0_43] : memref<976x128xf32, #tpu.memory_space<vmem>>, vector<1x32xf32>
    %c111 = arith.constant 111 : index
    %c0_44 = arith.constant 0 : index
    %53 = vector.load %arg4[%c111, %c0_44] : memref<976x128xf32, #tpu.memory_space<vmem>>, vector<1x32xf32>
    %54 = arith.addf %52, %53 : vector<1x32xf32>
    %c7_45 = arith.constant 7 : index
    %c0_46 = arith.constant 0 : index
    %55 = vector.load %arg6[%c7_45, %c0_46] : memref<16x32xf32, #tpu.memory_space<vmem>>, vector<1x32xf32>
    tpu.vector_store %arg6[%c7_45, %c0_46], %54 {strides = array<i32>} : memref<16x32xf32, #tpu.memory_space<vmem>>, vector<1x32xf32>,
    %c1_47 = arith.constant 1 : index
    %c0_48 = arith.constant 0 : index
    %56 = memref.load %arg1[%c1_47, %c0_48] : memref<2x8xi32, #tpu.memory_space<smem>>
    %c0_i32_49 = arith.constant 0 : i32
    %57 = arith.addi %c0_i32_49, %56 : i32
    %58 = arith.index_cast %57 : i32 to index
    %c0_50 = arith.constant 0 : index
    %59 = vector.load %arg4[%58, %c0_50] : memref<976x128xf32, #tpu.memory_space<vmem>>, vector<1x32xf32>
    %c104_51 = arith.constant 104 : index
    %c0_52 = arith.constant 0 : index
    %60 = vector.load %arg4[%c104_51, %c0_52] : memref<976x128xf32, #tpu.memory_space<vmem>>, vector<1x32xf32>
    %61 = arith.addf %59, %60 : vector<1x32xf32>
    %c8 = arith.constant 8 : index
    %c0_53 = arith.constant 0 : index
    %62 = vector.load %arg6[%c8, %c0_53] : memref<16x32xf32, #tpu.memory_space<vmem>>, vector<1x32xf32>
    tpu.vector_store %arg6[%c8, %c0_53], %61 {strides = array<i32>} : memref<16x32xf32, #tpu.memory_space<vmem>>, vector<1x32xf32>,
    %c1_54 = arith.constant 1 : index
    %c1_55 = arith.constant 1 : index
    %63 = memref.load %arg1[%c1_54, %c1_55] : memref<2x8xi32, #tpu.memory_space<smem>>
    %c0_i32_56 = arith.constant 0 : i32
    %64 = arith.addi %c0_i32_56, %63 : i32
    %65 = arith.index_cast %64 : i32 to index
    %c0_57 = arith.constant 0 : index
    %66 = vector.load %arg4[%65, %c0_57] : memref<976x128xf32, #tpu.memory_space<vmem>>, vector<1x32xf32>
    %c105_58 = arith.constant 105 : index
    %c0_59 = arith.constant 0 : index
    %67 = vector.load %arg4[%c105_58, %c0_59] : memref<976x128xf32, #tpu.memory_space<vmem>>, vector<1x32xf32>
    %68 = arith.addf %66, %67 : vector<1x32xf32>
    %c9 = arith.constant 9 : index
    %c0_60 = arith.constant 0 : index
    %69 = vector.load %arg6[%c9, %c0_60] : memref<16x32xf32, #tpu.memory_space<vmem>>, vector<1x32xf32>
    tpu.vector_store %arg6[%c9, %c0_60], %68 {strides = array<i32>} : memref<16x32xf32, #tpu.memory_space<vmem>>, vector<1x32xf32>,
    %c1_61 = arith.constant 1 : index
    %c2_62 = arith.constant 2 : index
    %70 = memref.load %arg1[%c1_61, %c2_62] : memref<2x8xi32, #tpu.memory_space<smem>>
    %c0_i32_63 = arith.constant 0 : i32
    %71 = arith.addi %c0_i32_63, %70 : i32
    %72 = arith.index_cast %71 : i32 to index
    %c0_64 = arith.constant 0 : index
    %73 = vector.load %arg4[%72, %c0_64] : memref<976x128xf32, #tpu.memory_space<vmem>>, vector<1x32xf32>
    %c106_65 = arith.constant 106 : index
    %c0_66 = arith.constant 0 : index
    %74 = vector.load %arg4[%c106_65, %c0_66] : memref<976x128xf32, #tpu.memory_space<vmem>>, vector<1x32xf32>
    %75 = arith.addf %73, %74 : vector<1x32xf32>
    %c10 = arith.constant 10 : index
    %c0_67 = arith.constant 0 : index
    %76 = vector.load %arg6[%c10, %c0_67] : memref<16x32xf32, #tpu.memory_space<vmem>>, vector<1x32xf32>
    tpu.vector_store %arg6[%c10, %c0_67], %75 {strides = array<i32>} : memref<16x32xf32, #tpu.memory_space<vmem>>, vector<1x32xf32>,
    %c1_68 = arith.constant 1 : index
    %c3_69 = arith.constant 3 : index
    %77 = memref.load %arg1[%c1_68, %c3_69] : memref<2x8xi32, #tpu.memory_space<smem>>
    %c0_i32_70 = arith.constant 0 : i32
    %78 = arith.addi %c0_i32_70, %77 : i32
    %79 = arith.index_cast %78 : i32 to index
    %c0_71 = arith.constant 0 : index
    %80 = vector.load %arg4[%79, %c0_71] : memref<976x128xf32, #tpu.memory_space<vmem>>, vector<1x32xf32>
    %c107_72 = arith.constant 107 : index
    %c0_73 = arith.constant 0 : index
    %81 = vector.load %arg4[%c107_72, %c0_73] : memref<976x128xf32, #tpu.memory_space<vmem>>, vector<1x32xf32>
    %82 = arith.addf %80, %81 : vector<1x32xf32>
    %c11 = arith.constant 11 : index
    %c0_74 = arith.constant 0 : index
    %83 = vector.load %arg6[%c11, %c0_74] : memref<16x32xf32, #tpu.memory_space<vmem>>, vector<1x32xf32>
    tpu.vector_store %arg6[%c11, %c0_74], %82 {strides = array<i32>} : memref<16x32xf32, #tpu.memory_space<vmem>>, vector<1x32xf32>,
    %c1_75 = arith.constant 1 : index
    %c4_76 = arith.constant 4 : index
    %84 = memref.load %arg1[%c1_75, %c4_76] : memref<2x8xi32, #tpu.memory_space<smem>>
    %c0_i32_77 = arith.constant 0 : i32
    %85 = arith.addi %c0_i32_77, %84 : i32
    %86 = arith.index_cast %85 : i32 to index
    %c0_78 = arith.constant 0 : index
    %87 = vector.load %arg4[%86, %c0_78] : memref<976x128xf32, #tpu.memory_space<vmem>>, vector<1x32xf32>
    %c108_79 = arith.constant 108 : index
    %c0_80 = arith.constant 0 : index
    %88 = vector.load %arg4[%c108_79, %c0_80] : memref<976x128xf32, #tpu.memory_space<vmem>>, vector<1x32xf32>
    %89 = arith.addf %87, %88 : vector<1x32xf32>
    %c12 = arith.constant 12 : index
    %c0_81 = arith.constant 0 : index
    %90 = vector.load %arg6[%c12, %c0_81] : memref<16x32xf32, #tpu.memory_space<vmem>>, vector<1x32xf32>
    tpu.vector_store %arg6[%c12, %c0_81], %89 {strides = array<i32>} : memref<16x32xf32, #tpu.memory_space<vmem>>, vector<1x32xf32>,
    %c1_82 = arith.constant 1 : index
    %c5_83 = arith.constant 5 : index
    %91 = memref.load %arg1[%c1_82, %c5_83] : memref<2x8xi32, #tpu.memory_space<smem>>
    %c0_i32_84 = arith.constant 0 : i32
    %92 = arith.addi %c0_i32_84, %91 : i32
    %93 = arith.index_cast %92 : i32 to index
    %c0_85 = arith.constant 0 : index
    %94 = vector.load %arg4[%93, %c0_85] : memref<976x128xf32, #tpu.memory_space<vmem>>, vector<1x32xf32>
    %c109_86 = arith.constant 109 : index
    %c0_87 = arith.constant 0 : index
    %95 = vector.load %arg4[%c109_86, %c0_87] : memref<976x128xf32, #tpu.memory_space<vmem>>, vector<1x32xf32>
    %96 = arith.addf %94, %95 : vector<1x32xf32>
    %c13 = arith.constant 13 : index
    %c0_88 = arith.constant 0 : index
    %97 = vector.load %arg6[%c13, %c0_88] : memref<16x32xf32, #tpu.memory_space<vmem>>, vector<1x32xf32>
    tpu.vector_store %arg6[%c13, %c0_88], %96 {strides = array<i32>} : memref<16x32xf32, #tpu.memory_space<vmem>>, vector<1x32xf32>,
    %c1_89 = arith.constant 1 : index
    %c6_90 = arith.constant 6 : index
    %98 = memref.load %arg1[%c1_89, %c6_90] : memref<2x8xi32, #tpu.memory_space<smem>>
    %c0_i32_91 = arith.constant 0 : i32
    %99 = arith.addi %c0_i32_91, %98 : i32
    %100 = arith.index_cast %99 : i32 to index
    %c0_92 = arith.constant 0 : index
    %101 = vector.load %arg4[%100, %c0_92] : memref<976x128xf32, #tpu.memory_space<vmem>>, vector<1x32xf32>
    %c110_93 = arith.constant 110 : index
    %c0_94 = arith.constant 0 : index
    %102 = vector.load %arg4[%c110_93, %c0_94] : memref<976x128xf32, #tpu.memory_space<vmem>>, vector<1x32xf32>
    %103 = arith.addf %101, %102 : vector<1x32xf32>
    %c14 = arith.constant 14 : index
    %c0_95 = arith.constant 0 : index
    %104 = vector.load %arg6[%c14, %c0_95] : memref<16x32xf32, #tpu.memory_space<vmem>>, vector<1x32xf32>
    tpu.vector_store %arg6[%c14, %c0_95], %103 {strides = array<i32>} : memref<16x32xf32, #tpu.memory_space<vmem>>, vector<1x32xf32>,
    %c1_96 = arith.constant 1 : index
    %c7_97 = arith.constant 7 : index
    %105 = memref.load %arg1[%c1_96, %c7_97] : memref<2x8xi32, #tpu.memory_space<smem>>
    %c0_i32_98 = arith.constant 0 : i32
    %106 = arith.addi %c0_i32_98, %105 : i32
    %107 = arith.index_cast %106 : i32 to index
    %c0_99 = arith.constant 0 : index
    %108 = vector.load %arg4[%107, %c0_99] : memref<976x128xf32, #tpu.memory_space<vmem>>, vector<1x32xf32>
    %c111_100 = arith.constant 111 : index
    %c0_101 = arith.constant 0 : index
    %109 = vector.load %arg4[%c111_100, %c0_101] : memref<976x128xf32, #tpu.memory_space<vmem>>, vector<1x32xf32>
    %110 = arith.addf %108, %109 : vector<1x32xf32>
    %c15 = arith.constant 15 : index
    %c0_102 = arith.constant 0 : index
    %111 = vector.load %arg6[%c15, %c0_102] : memref<16x32xf32, #tpu.memory_space<vmem>>, vector<1x32xf32>
    tpu.vector_store %arg6[%c15, %c0_102], %110 {strides = array<i32>} : memref<16x32xf32, #tpu.memory_space<vmem>>, vector<1x32xf32>,
    %c0_103 = arith.constant 0 : index
    %c0_104 = arith.constant 0 : index
    %112 = vector.load %arg6[%c0_103, %c0_104] : memref<16x32xf32, #tpu.memory_space<vmem>>, vector<16x32xf32>
    %c943 = arith.constant 943 : index
    %c0_105 = arith.constant 0 : index
    %113 = vector.load %arg4[%c943, %c0_105] : memref<976x128xf32, #tpu.memory_space<vmem>>, vector<1x32xf32>
    %c944 = arith.constant 944 : index
    %c0_106 = arith.constant 0 : index
    %114 = vector.load %arg4[%c944, %c0_106] : memref<976x128xf32, #tpu.memory_space<vmem>>, vector<1x32xf32>
    %cst = arith.constant dense<0.000000e+00> : vector<16xf32>
    %115 = vector.multi_reduction <add>, %112, %cst [1] : vector<16x32xf32> to vector<16xf32>
    %116 = vector.shape_cast %115 : vector<16xf32> to vector<16x1xf32>
    %cst_107 = arith.constant 3.200000e+01 : f32
    %117 = vector.broadcast %cst_107 : f32 to vector<16x1xf32>
    %118 = arith.divf %116, %117 : vector<16x1xf32>
    %119 = vector.broadcast %118 : vector<16x1xf32> to vector<16x32xf32>
    %120 = arith.subf %112, %119 : vector<16x32xf32>
    %121 = arith.mulf %120, %120 : vector<16x32xf32>
    %cst_108 = arith.constant dense<0.000000e+00> : vector<16xf32>
    %122 = vector.multi_reduction <add>, %121, %cst_108 [1] : vector<16x32xf32> to vector<16xf32>
    %123 = vector.shape_cast %122 : vector<16xf32> to vector<16x1xf32>
    %cst_109 = arith.constant 3.200000e+01 : f32
    %124 = vector.broadcast %cst_109 : f32 to vector<16x1xf32>
    %125 = arith.divf %123, %124 : vector<16x1xf32>
    %126 = vector.broadcast %118 : vector<16x1xf32> to vector<16x32xf32>
    %127 = arith.subf %112, %126 : vector<16x32xf32>
    %cst_110 = arith.constant 9.99999996E-13 : f32
    %128 = vector.broadcast %cst_110 : f32 to vector<16x1xf32>
    %129 = arith.addf %125, %128 : vector<16x1xf32>
    %130 = math.rsqrt %129 : vector<16x1xf32>
    %131 = vector.broadcast %130 : vector<16x1xf32> to vector<16x32xf32>
    %132 = arith.mulf %127, %131 : vector<16x32xf32>
    %133 = vector.broadcast %113 : vector<1x32xf32> to vector<16x32xf32>
    %134 = arith.mulf %132, %133 : vector<16x32xf32>
    %135 = vector.broadcast %114 : vector<1x32xf32> to vector<16x32xf32>
    %136 = arith.addf %134, %135 : vector<16x32xf32>
    %cst_111 = arith.constant -1.000000e+09 : f32
    %137 = vector.broadcast %cst_111 : f32 to vector<16x16xf32>
    %c0_112 = arith.constant 0 : index
    %c0_113 = arith.constant 0 : index
    %138 = vector.load %arg7[%c0_112, %c0_113] : memref<16x16xf32, #tpu.memory_space<vmem>>, vector<16x16xf32>
    tpu.vector_store %arg7[%c0_112, %c0_113], %137 {strides = array<i32>} : memref<16x16xf32, #tpu.memory_space<vmem>>, vector<16x16xf32>,
    %c0_114 = arith.constant 0 : index
    %c0_115 = arith.constant 0 : index
    %139 = vector.load %arg2[%c0_114, %c0_115] : memref<2x8xf32, #tpu.memory_space<vmem>>, vector<1x8xf32>
    %cst_116 = arith.constant 1.000000e+00 : f32
    %140 = vector.broadcast %cst_116 : f32 to vector<1x8xf32>
    %141 = arith.subf %139, %140 : vector<1x8xf32>
    %cst_117 = arith.constant 1.000000e+09 : f32
    %142 = vector.broadcast %cst_117 : f32 to vector<1x8xf32>
    %143 = arith.mulf %141, %142 : vector<1x8xf32>
    %144 = vector.shape_cast %143 : vector<1x8xf32> to vector<1x8xf32>
    %145 = vector.broadcast %144 : vector<1x8xf32> to vector<8x8xf32>
    %c0_118 = arith.constant 0 : index
    %c0_119 = arith.constant 0 : index
    %146 = vector.load %arg7[%c0_118, %c0_119] : memref<16x16xf32, #tpu.memory_space<vmem>>, vector<8x8xf32>
    tpu.vector_store %arg7[%c0_118, %c0_119], %145 {strides = array<i32>} : memref<16x16xf32, #tpu.memory_space<vmem>>, vector<8x8xf32>,
    %c1_120 = arith.constant 1 : index
    %c0_121 = arith.constant 0 : index
    %147 = vector.load %arg2[%c1_120, %c0_121] : memref<2x8xf32, #tpu.memory_space<vmem>>, vector<1x8xf32>
    %cst_122 = arith.constant 1.000000e+00 : f32
    %148 = vector.broadcast %cst_122 : f32 to vector<1x8xf32>
    %149 = arith.subf %147, %148 : vector<1x8xf32>
    %cst_123 = arith.constant 1.000000e+09 : f32
    %150 = vector.broadcast %cst_123 : f32 to vector<1x8xf32>
    %151 = arith.mulf %149, %150 : vector<1x8xf32>
    %152 = vector.shape_cast %151 : vector<1x8xf32> to vector<1x8xf32>
    %153 = vector.broadcast %152 : vector<1x8xf32> to vector<8x8xf32>
    %c8_124 = arith.constant 8 : index
    %c8_125 = arith.constant 8 : index
    %154 = vector.load %arg7[%c8_124, %c8_125] : memref<16x16xf32, #tpu.memory_space<vmem>>, vector<8x8xf32>
    tpu.vector_store %arg7[%c8_124, %c8_125], %153 {strides = array<i32>} : memref<16x16xf32, #tpu.memory_space<vmem>>, vector<8x8xf32>,
    %c0_126 = arith.constant 0 : index
    %c0_127 = arith.constant 0 : index
    %155 = vector.load %arg7[%c0_126, %c0_127] : memref<16x16xf32, #tpu.memory_space<vmem>>, vector<16x16xf32>
    %cst_128 = arith.constant 0.000000e+00 : f32
    %156 = vector.broadcast %cst_128 : f32 to vector<16x32xf32>
    %c136 = arith.constant 136 : index
    %c0_129 = arith.constant 0 : index
    %157 = vector.load %arg4[%c136, %c0_129] : memref<976x128xf32, #tpu.memory_space<vmem>>, vector<32x16xf32>
    %cst_130 = arith.constant dense<0.000000e+00> : vector<16x16xf32>
    %158 = tpu.matmul %136, %157, %cst_130 {dimension_numbers = #tpu.dot_dimension_numbers<[1], [0], [0], [1], [0, 0, 1, 1], [], []>} : vector<16x32xf32>, vector<32x16xf32>, vector<16x16xf32> -> vector<16x16xf32>
    %c945 = arith.constant 945 : index
    %c0_131 = arith.constant 0 : index
    %159 = vector.load %arg4[%c945, %c0_131] : memref<976x128xf32, #tpu.memory_space<vmem>>, vector<1x16xf32>
    %160 = vector.broadcast %159 : vector<1x16xf32> to vector<16x16xf32>
    %161 = arith.addf %158, %160 : vector<16x16xf32>
    %c168 = arith.constant 168 : index
    %c0_132 = arith.constant 0 : index
    %162 = vector.load %arg4[%c168, %c0_132] : memref<976x128xf32, #tpu.memory_space<vmem>>, vector<32x16xf32>
    %cst_133 = arith.constant dense<0.000000e+00> : vector<16x16xf32>
    %163 = tpu.matmul %136, %162, %cst_133 {dimension_numbers = #tpu.dot_dimension_numbers<[1], [0], [0], [1], [0, 0, 1, 1], [], []>} : vector<16x32xf32>, vector<32x16xf32>, vector<16x16xf32> -> vector<16x16xf32>
    %c946 = arith.constant 946 : index
    %c0_134 = arith.constant 0 : index
    %164 = vector.load %arg4[%c946, %c0_134] : memref<976x128xf32, #tpu.memory_space<vmem>>, vector<1x16xf32>
    %165 = vector.broadcast %164 : vector<1x16xf32> to vector<16x16xf32>
    %166 = arith.addf %163, %165 : vector<16x16xf32>
    %c200 = arith.constant 200 : index
    %c0_135 = arith.constant 0 : index
    %167 = vector.load %arg4[%c200, %c0_135] : memref<976x128xf32, #tpu.memory_space<vmem>>, vector<32x16xf32>
    %cst_136 = arith.constant dense<0.000000e+00> : vector<16x16xf32>
    %168 = tpu.matmul %136, %167, %cst_136 {dimension_numbers = #tpu.dot_dimension_numbers<[1], [0], [0], [1], [0, 0, 1, 1], [], []>} : vector<16x32xf32>, vector<32x16xf32>, vector<16x16xf32> -> vector<16x16xf32>
    %c947 = arith.constant 947 : index
    %c0_137 = arith.constant 0 : index
    %169 = vector.load %arg4[%c947, %c0_137] : memref<976x128xf32, #tpu.memory_space<vmem>>, vector<1x16xf32>
    %170 = vector.broadcast %169 : vector<1x16xf32> to vector<16x16xf32>
    %171 = arith.addf %168, %170 : vector<16x16xf32>
    %cst_138 = arith.constant dense<0.000000e+00> : vector<16x16xf32>
    %172 = tpu.matmul %161, %166, %cst_138 {dimension_numbers = #tpu.dot_dimension_numbers<[1], [1], [0], [0], [0, 0, 1, 0], [], []>} : vector<16x16xf32>, vector<16x16xf32>, vector<16x16xf32> -> vector<16x16xf32>
    %cst_139 = arith.constant 2.500000e-01 : f32
    %173 = vector.broadcast %cst_139 : f32 to vector<16x16xf32>
    %174 = arith.mulf %172, %173 : vector<16x16xf32>
    %175 = arith.addf %174, %155 : vector<16x16xf32>
    %cst_140 = arith.constant dense<0xFF800000> : vector<16xf32>
    %176 = vector.multi_reduction <maximumf>, %175, %cst_140 [1] : vector<16x16xf32> to vector<16xf32>
    %177 = vector.shape_cast %176 : vector<16xf32> to vector<16x1xf32>
    %178 = vector.broadcast %177 : vector<16x1xf32> to vector<16x16xf32>
    %179 = arith.subf %175, %178 : vector<16x16xf32>
    %180 = math.exp %179 : vector<16x16xf32>
    %cst_141 = arith.constant dense<0.000000e+00> : vector<16xf32>
    %181 = vector.multi_reduction <add>, %180, %cst_141 [1] : vector<16x16xf32> to vector<16xf32>
    %182 = vector.shape_cast %181 : vector<16xf32> to vector<16x1xf32>
    %183 = vector.broadcast %182 : vector<16x1xf32> to vector<16x16xf32>
    %184 = arith.divf %180, %183 : vector<16x16xf32>
    %cst_142 = arith.constant dense<0.000000e+00> : vector<16x16xf32>
    %185 = tpu.matmul %184, %171, %cst_142 {dimension_numbers = #tpu.dot_dimension_numbers<[1], [0], [0], [1], [0, 0, 1, 1], [], []>} : vector<16x16xf32>, vector<16x16xf32>, vector<16x16xf32> -> vector<16x16xf32>
    %c232 = arith.constant 232 : index
    %c0_143 = arith.constant 0 : index
    %186 = vector.load %arg4[%c232, %c0_143] : memref<976x128xf32, #tpu.memory_space<vmem>>, vector<16x32xf32>
    %cst_144 = arith.constant dense<0.000000e+00> : vector<16x32xf32>
    %187 = tpu.matmul %185, %186, %cst_144 {dimension_numbers = #tpu.dot_dimension_numbers<[1], [0], [0], [1], [0, 0, 1, 1], [], []>} : vector<16x16xf32>, vector<16x32xf32>, vector<16x32xf32> -> vector<16x32xf32>
    %188 = arith.addf %156, %187 : vector<16x32xf32>
    %c248 = arith.constant 248 : index
    %c0_145 = arith.constant 0 : index
    %189 = vector.load %arg4[%c248, %c0_145] : memref<976x128xf32, #tpu.memory_space<vmem>>, vector<32x16xf32>
    %cst_146 = arith.constant dense<0.000000e+00> : vector<16x16xf32>
    %190 = tpu.matmul %136, %189, %cst_146 {dimension_numbers = #tpu.dot_dimension_numbers<[1], [0], [0], [1], [0, 0, 1, 1], [], []>} : vector<16x32xf32>, vector<32x16xf32>, vector<16x16xf32> -> vector<16x16xf32>
    %c948 = arith.constant 948 : index
    %c0_147 = arith.constant 0 : index
    %191 = vector.load %arg4[%c948, %c0_147] : memref<976x128xf32, #tpu.memory_space<vmem>>, vector<1x16xf32>
    %192 = vector.broadcast %191 : vector<1x16xf32> to vector<16x16xf32>
    %193 = arith.addf %190, %192 : vector<16x16xf32>
    %c280 = arith.constant 280 : index
    %c0_148 = arith.constant 0 : index
    %194 = vector.load %arg4[%c280, %c0_148] : memref<976x128xf32, #tpu.memory_space<vmem>>, vector<32x16xf32>
    %cst_149 = arith.constant dense<0.000000e+00> : vector<16x16xf32>
    %195 = tpu.matmul %136, %194, %cst_149 {dimension_numbers = #tpu.dot_dimension_numbers<[1], [0], [0], [1], [0, 0, 1, 1], [], []>} : vector<16x32xf32>, vector<32x16xf32>, vector<16x16xf32> -> vector<16x16xf32>
    %c949 = arith.constant 949 : index
    %c0_150 = arith.constant 0 : index
    %196 = vector.load %arg4[%c949, %c0_150] : memref<976x128xf32, #tpu.memory_space<vmem>>, vector<1x16xf32>
    %197 = vector.broadcast %196 : vector<1x16xf32> to vector<16x16xf32>
    %198 = arith.addf %195, %197 : vector<16x16xf32>
    %c312 = arith.constant 312 : index
    %c0_151 = arith.constant 0 : index
    %199 = vector.load %arg4[%c312, %c0_151] : memref<976x128xf32, #tpu.memory_space<vmem>>, vector<32x16xf32>
    %cst_152 = arith.constant dense<0.000000e+00> : vector<16x16xf32>
    %200 = tpu.matmul %136, %199, %cst_152 {dimension_numbers = #tpu.dot_dimension_numbers<[1], [0], [0], [1], [0, 0, 1, 1], [], []>} : vector<16x32xf32>, vector<32x16xf32>, vector<16x16xf32> -> vector<16x16xf32>
    %c950 = arith.constant 950 : index
    %c0_153 = arith.constant 0 : index
    %201 = vector.load %arg4[%c950, %c0_153] : memref<976x128xf32, #tpu.memory_space<vmem>>, vector<1x16xf32>
    %202 = vector.broadcast %201 : vector<1x16xf32> to vector<16x16xf32>
    %203 = arith.addf %200, %202 : vector<16x16xf32>
    %cst_154 = arith.constant dense<0.000000e+00> : vector<16x16xf32>
    %204 = tpu.matmul %193, %198, %cst_154 {dimension_numbers = #tpu.dot_dimension_numbers<[1], [1], [0], [0], [0, 0, 1, 0], [], []>} : vector<16x16xf32>, vector<16x16xf32>, vector<16x16xf32> -> vector<16x16xf32>
    %cst_155 = arith.constant 2.500000e-01 : f32
    %205 = vector.broadcast %cst_155 : f32 to vector<16x16xf32>
    %206 = arith.mulf %204, %205 : vector<16x16xf32>
    %207 = arith.addf %206, %155 : vector<16x16xf32>
    %cst_156 = arith.constant dense<0xFF800000> : vector<16xf32>
    %208 = vector.multi_reduction <maximumf>, %207, %cst_156 [1] : vector<16x16xf32> to vector<16xf32>
    %209 = vector.shape_cast %208 : vector<16xf32> to vector<16x1xf32>
    %210 = vector.broadcast %209 : vector<16x1xf32> to vector<16x16xf32>
    %211 = arith.subf %207, %210 : vector<16x16xf32>
    %212 = math.exp %211 : vector<16x16xf32>
    %cst_157 = arith.constant dense<0.000000e+00> : vector<16xf32>
    %213 = vector.multi_reduction <add>, %212, %cst_157 [1] : vector<16x16xf32> to vector<16xf32>
    %214 = vector.shape_cast %213 : vector<16xf32> to vector<16x1xf32>
    %215 = vector.broadcast %214 : vector<16x1xf32> to vector<16x16xf32>
    %216 = arith.divf %212, %215 : vector<16x16xf32>
    %cst_158 = arith.constant dense<0.000000e+00> : vector<16x16xf32>
    %217 = tpu.matmul %216, %203, %cst_158 {dimension_numbers = #tpu.dot_dimension_numbers<[1], [0], [0], [1], [0, 0, 1, 1], [], []>} : vector<16x16xf32>, vector<16x16xf32>, vector<16x16xf32> -> vector<16x16xf32>
    %c344 = arith.constant 344 : index
    %c0_159 = arith.constant 0 : index
    %218 = vector.load %arg4[%c344, %c0_159] : memref<976x128xf32, #tpu.memory_space<vmem>>, vector<16x32xf32>
    %cst_160 = arith.constant dense<0.000000e+00> : vector<16x32xf32>
    %219 = tpu.matmul %217, %218, %cst_160 {dimension_numbers = #tpu.dot_dimension_numbers<[1], [0], [0], [1], [0, 0, 1, 1], [], []>} : vector<16x16xf32>, vector<16x32xf32>, vector<16x32xf32> -> vector<16x32xf32>
    %220 = arith.addf %188, %219 : vector<16x32xf32>
    %c951 = arith.constant 951 : index
    %c0_161 = arith.constant 0 : index
    %221 = vector.load %arg4[%c951, %c0_161] : memref<976x128xf32, #tpu.memory_space<vmem>>, vector<1x32xf32>
    %222 = vector.broadcast %221 : vector<1x32xf32> to vector<16x32xf32>
    %223 = arith.addf %220, %222 : vector<16x32xf32>
    %224 = arith.addf %223, %136 : vector<16x32xf32>
    %c952 = arith.constant 952 : index
    %c0_162 = arith.constant 0 : index
    %225 = vector.load %arg4[%c952, %c0_162] : memref<976x128xf32, #tpu.memory_space<vmem>>, vector<1x32xf32>
    %c953 = arith.constant 953 : index
    %c0_163 = arith.constant 0 : index
    %226 = vector.load %arg4[%c953, %c0_163] : memref<976x128xf32, #tpu.memory_space<vmem>>, vector<1x32xf32>
    %cst_164 = arith.constant dense<0.000000e+00> : vector<16xf32>
    %227 = vector.multi_reduction <add>, %224, %cst_164 [1] : vector<16x32xf32> to vector<16xf32>
    %228 = vector.shape_cast %227 : vector<16xf32> to vector<16x1xf32>
    %cst_165 = arith.constant 3.200000e+01 : f32
    %229 = vector.broadcast %cst_165 : f32 to vector<16x1xf32>
    %230 = arith.divf %228, %229 : vector<16x1xf32>
    %231 = vector.broadcast %230 : vector<16x1xf32> to vector<16x32xf32>
    %232 = arith.subf %224, %231 : vector<16x32xf32>
    %233 = arith.mulf %232, %232 : vector<16x32xf32>
    %cst_166 = arith.constant dense<0.000000e+00> : vector<16xf32>
    %234 = vector.multi_reduction <add>, %233, %cst_166 [1] : vector<16x32xf32> to vector<16xf32>
    %235 = vector.shape_cast %234 : vector<16xf32> to vector<16x1xf32>
    %cst_167 = arith.constant 3.200000e+01 : f32
    %236 = vector.broadcast %cst_167 : f32 to vector<16x1xf32>
    %237 = arith.divf %235, %236 : vector<16x1xf32>
    %238 = vector.broadcast %230 : vector<16x1xf32> to vector<16x32xf32>
    %239 = arith.subf %224, %238 : vector<16x32xf32>
    %cst_168 = arith.constant 9.99999996E-13 : f32
    %240 = vector.broadcast %cst_168 : f32 to vector<16x1xf32>
    %241 = arith.addf %237, %240 : vector<16x1xf32>
    %242 = math.rsqrt %241 : vector<16x1xf32>
    %243 = vector.broadcast %242 : vector<16x1xf32> to vector<16x32xf32>
    %244 = arith.mulf %239, %243 : vector<16x32xf32>
    %245 = vector.broadcast %225 : vector<1x32xf32> to vector<16x32xf32>
    %246 = arith.mulf %244, %245 : vector<16x32xf32>
    %247 = vector.broadcast %226 : vector<1x32xf32> to vector<16x32xf32>
    %248 = arith.addf %246, %247 : vector<16x32xf32>
    %c360 = arith.constant 360 : index
    %c0_169 = arith.constant 0 : index
    %249 = vector.load %arg4[%c360, %c0_169] : memref<976x128xf32, #tpu.memory_space<vmem>>, vector<32x128xf32>
    %cst_170 = arith.constant dense<0.000000e+00> : vector<16x128xf32>
    %250 = tpu.matmul %248, %249, %cst_170 {dimension_numbers = #tpu.dot_dimension_numbers<[1], [0], [0], [1], [0, 0, 1, 1], [], []>} : vector<16x32xf32>, vector<32x128xf32>, vector<16x128xf32> -> vector<16x128xf32>
    %c954 = arith.constant 954 : index
    %c0_171 = arith.constant 0 : index
    %251 = vector.load %arg4[%c954, %c0_171] : memref<976x128xf32, #tpu.memory_space<vmem>>, vector<1x128xf32>
    %252 = vector.broadcast %251 : vector<1x128xf32> to vector<16x128xf32>
    %253 = arith.addf %250, %252 : vector<16x128xf32>
    %254 = arith.mulf %253, %253 : vector<16x128xf32>
    %255 = arith.mulf %253, %254 : vector<16x128xf32>
    %cst_172 = arith.constant 4.471500e-02 : f32
    %256 = vector.broadcast %cst_172 : f32 to vector<16x128xf32>
    %257 = arith.mulf %256, %255 : vector<16x128xf32>
    %258 = arith.addf %253, %257 : vector<16x128xf32>
    %cst_173 = arith.constant 0.797884583 : f32
    %259 = vector.broadcast %cst_173 : f32 to vector<16x128xf32>
    %260 = arith.mulf %259, %258 : vector<16x128xf32>
    %261 = math.tanh %260 : vector<16x128xf32>
    %cst_174 = arith.constant 1.000000e+00 : f32
    %262 = vector.broadcast %cst_174 : f32 to vector<16x128xf32>
    %263 = arith.addf %262, %261 : vector<16x128xf32>
    %cst_175 = arith.constant 5.000000e-01 : f32
    %264 = vector.broadcast %cst_175 : f32 to vector<16x128xf32>
    %265 = arith.mulf %264, %263 : vector<16x128xf32>
    %266 = arith.mulf %253, %265 : vector<16x128xf32>
    %c392 = arith.constant 392 : index
    %c0_176 = arith.constant 0 : index
    %267 = vector.load %arg4[%c392, %c0_176] : memref<976x128xf32, #tpu.memory_space<vmem>>, vector<128x32xf32>
    %cst_177 = arith.constant dense<0.000000e+00> : vector<16x32xf32>
    %268 = tpu.matmul %266, %267, %cst_177 {dimension_numbers = #tpu.dot_dimension_numbers<[1], [0], [0], [1], [0, 0, 1, 1], [], []>} : vector<16x128xf32>, vector<128x32xf32>, vector<16x32xf32> -> vector<16x32xf32>
    %c955 = arith.constant 955 : index
    %c0_178 = arith.constant 0 : index
    %269 = vector.load %arg4[%c955, %c0_178] : memref<976x128xf32, #tpu.memory_space<vmem>>, vector<1x32xf32>
    %270 = vector.broadcast %269 : vector<1x32xf32> to vector<16x32xf32>
    %271 = arith.addf %268, %270 : vector<16x32xf32>
    %272 = arith.addf %271, %248 : vector<16x32xf32>
    %c956 = arith.constant 956 : index
    %c0_179 = arith.constant 0 : index
    %273 = vector.load %arg4[%c956, %c0_179] : memref<976x128xf32, #tpu.memory_space<vmem>>, vector<1x32xf32>
    %c957 = arith.constant 957 : index
    %c0_180 = arith.constant 0 : index
    %274 = vector.load %arg4[%c957, %c0_180] : memref<976x128xf32, #tpu.memory_space<vmem>>, vector<1x32xf32>
    %cst_181 = arith.constant dense<0.000000e+00> : vector<16xf32>
    %275 = vector.multi_reduction <add>, %272, %cst_181 [1] : vector<16x32xf32> to vector<16xf32>
    %276 = vector.shape_cast %275 : vector<16xf32> to vector<16x1xf32>
    %cst_182 = arith.constant 3.200000e+01 : f32
    %277 = vector.broadcast %cst_182 : f32 to vector<16x1xf32>
    %278 = arith.divf %276, %277 : vector<16x1xf32>
    %279 = vector.broadcast %278 : vector<16x1xf32> to vector<16x32xf32>
    %280 = arith.subf %272, %279 : vector<16x32xf32>
    %281 = arith.mulf %280, %280 : vector<16x32xf32>
    %cst_183 = arith.constant dense<0.000000e+00> : vector<16xf32>
    %282 = vector.multi_reduction <add>, %281, %cst_183 [1] : vector<16x32xf32> to vector<16xf32>
    %283 = vector.shape_cast %282 : vector<16xf32> to vector<16x1xf32>
    %cst_184 = arith.constant 3.200000e+01 : f32
    %284 = vector.broadcast %cst_184 : f32 to vector<16x1xf32>
    %285 = arith.divf %283, %284 : vector<16x1xf32>
    %286 = vector.broadcast %278 : vector<16x1xf32> to vector<16x32xf32>
    %287 = arith.subf %272, %286 : vector<16x32xf32>
    %cst_185 = arith.constant 9.99999996E-13 : f32
    %288 = vector.broadcast %cst_185 : f32 to vector<16x1xf32>
    %289 = arith.addf %285, %288 : vector<16x1xf32>
    %290 = math.rsqrt %289 : vector<16x1xf32>
    %291 = vector.broadcast %290 : vector<16x1xf32> to vector<16x32xf32>
    %292 = arith.mulf %287, %291 : vector<16x32xf32>
    %293 = vector.broadcast %273 : vector<1x32xf32> to vector<16x32xf32>
    %294 = arith.mulf %292, %293 : vector<16x32xf32>
    %295 = vector.broadcast %274 : vector<1x32xf32> to vector<16x32xf32>
    %296 = arith.addf %294, %295 : vector<16x32xf32>
    %cst_186 = arith.constant 0.000000e+00 : f32
    %297 = vector.broadcast %cst_186 : f32 to vector<16x32xf32>
    %c520 = arith.constant 520 : index
    %c0_187 = arith.constant 0 : index
    %298 = vector.load %arg4[%c520, %c0_187] : memref<976x128xf32, #tpu.memory_space<vmem>>, vector<32x16xf32>
    %cst_188 = arith.constant dense<0.000000e+00> : vector<16x16xf32>
    %299 = tpu.matmul %296, %298, %cst_188 {dimension_numbers = #tpu.dot_dimension_numbers<[1], [0], [0], [1], [0, 0, 1, 1], [], []>} : vector<16x32xf32>, vector<32x16xf32>, vector<16x16xf32> -> vector<16x16xf32>
    %c958 = arith.constant 958 : index
    %c0_189 = arith.constant 0 : index
    %300 = vector.load %arg4[%c958, %c0_189] : memref<976x128xf32, #tpu.memory_space<vmem>>, vector<1x16xf32>
    %301 = vector.broadcast %300 : vector<1x16xf32> to vector<16x16xf32>
    %302 = arith.addf %299, %301 : vector<16x16xf32>
    %c552 = arith.constant 552 : index
    %c0_190 = arith.constant 0 : index
    %303 = vector.load %arg4[%c552, %c0_190] : memref<976x128xf32, #tpu.memory_space<vmem>>, vector<32x16xf32>
    %cst_191 = arith.constant dense<0.000000e+00> : vector<16x16xf32>
    %304 = tpu.matmul %296, %303, %cst_191 {dimension_numbers = #tpu.dot_dimension_numbers<[1], [0], [0], [1], [0, 0, 1, 1], [], []>} : vector<16x32xf32>, vector<32x16xf32>, vector<16x16xf32> -> vector<16x16xf32>
    %c959 = arith.constant 959 : index
    %c0_192 = arith.constant 0 : index
    %305 = vector.load %arg4[%c959, %c0_192] : memref<976x128xf32, #tpu.memory_space<vmem>>, vector<1x16xf32>
    %306 = vector.broadcast %305 : vector<1x16xf32> to vector<16x16xf32>
    %307 = arith.addf %304, %306 : vector<16x16xf32>
    %c584 = arith.constant 584 : index
    %c0_193 = arith.constant 0 : index
    %308 = vector.load %arg4[%c584, %c0_193] : memref<976x128xf32, #tpu.memory_space<vmem>>, vector<32x16xf32>
    %cst_194 = arith.constant dense<0.000000e+00> : vector<16x16xf32>
    %309 = tpu.matmul %296, %308, %cst_194 {dimension_numbers = #tpu.dot_dimension_numbers<[1], [0], [0], [1], [0, 0, 1, 1], [], []>} : vector<16x32xf32>, vector<32x16xf32>, vector<16x16xf32> -> vector<16x16xf32>
    %c960 = arith.constant 960 : index
    %c0_195 = arith.constant 0 : index
    %310 = vector.load %arg4[%c960, %c0_195] : memref<976x128xf32, #tpu.memory_space<vmem>>, vector<1x16xf32>
    %311 = vector.broadcast %310 : vector<1x16xf32> to vector<16x16xf32>
    %312 = arith.addf %309, %311 : vector<16x16xf32>
    %cst_196 = arith.constant dense<0.000000e+00> : vector<16x16xf32>
    %313 = tpu.matmul %302, %307, %cst_196 {dimension_numbers = #tpu.dot_dimension_numbers<[1], [1], [0], [0], [0, 0, 1, 0], [], []>} : vector<16x16xf32>, vector<16x16xf32>, vector<16x16xf32> -> vector<16x16xf32>
    %cst_197 = arith.constant 2.500000e-01 : f32
    %314 = vector.broadcast %cst_197 : f32 to vector<16x16xf32>
    %315 = arith.mulf %313, %314 : vector<16x16xf32>
    %316 = arith.addf %315, %155 : vector<16x16xf32>
    %cst_198 = arith.constant dense<0xFF800000> : vector<16xf32>
    %317 = vector.multi_reduction <maximumf>, %316, %cst_198 [1] : vector<16x16xf32> to vector<16xf32>
    %318 = vector.shape_cast %317 : vector<16xf32> to vector<16x1xf32>
    %319 = vector.broadcast %318 : vector<16x1xf32> to vector<16x16xf32>
    %320 = arith.subf %316, %319 : vector<16x16xf32>
    %321 = math.exp %320 : vector<16x16xf32>
    %cst_199 = arith.constant dense<0.000000e+00> : vector<16xf32>
    %322 = vector.multi_reduction <add>, %321, %cst_199 [1] : vector<16x16xf32> to vector<16xf32>
    %323 = vector.shape_cast %322 : vector<16xf32> to vector<16x1xf32>
    %324 = vector.broadcast %323 : vector<16x1xf32> to vector<16x16xf32>
    %325 = arith.divf %321, %324 : vector<16x16xf32>
    %cst_200 = arith.constant dense<0.000000e+00> : vector<16x16xf32>
    %326 = tpu.matmul %325, %312, %cst_200 {dimension_numbers = #tpu.dot_dimension_numbers<[1], [0], [0], [1], [0, 0, 1, 1], [], []>} : vector<16x16xf32>, vector<16x16xf32>, vector<16x16xf32> -> vector<16x16xf32>
    %c616 = arith.constant 616 : index
    %c0_201 = arith.constant 0 : index
    %327 = vector.load %arg4[%c616, %c0_201] : memref<976x128xf32, #tpu.memory_space<vmem>>, vector<16x32xf32>
    %cst_202 = arith.constant dense<0.000000e+00> : vector<16x32xf32>
    %328 = tpu.matmul %326, %327, %cst_202 {dimension_numbers = #tpu.dot_dimension_numbers<[1], [0], [0], [1], [0, 0, 1, 1], [], []>} : vector<16x16xf32>, vector<16x32xf32>, vector<16x32xf32> -> vector<16x32xf32>
    %329 = arith.addf %297, %328 : vector<16x32xf32>
    %c632 = arith.constant 632 : index
    %c0_203 = arith.constant 0 : index
    %330 = vector.load %arg4[%c632, %c0_203] : memref<976x128xf32, #tpu.memory_space<vmem>>, vector<32x16xf32>
    %cst_204 = arith.constant dense<0.000000e+00> : vector<16x16xf32>
    %331 = tpu.matmul %296, %330, %cst_204 {dimension_numbers = #tpu.dot_dimension_numbers<[1], [0], [0], [1], [0, 0, 1, 1], [], []>} : vector<16x32xf32>, vector<32x16xf32>, vector<16x16xf32> -> vector<16x16xf32>
    %c961 = arith.constant 961 : index
    %c0_205 = arith.constant 0 : index
    %332 = vector.load %arg4[%c961, %c0_205] : memref<976x128xf32, #tpu.memory_space<vmem>>, vector<1x16xf32>
    %333 = vector.broadcast %332 : vector<1x16xf32> to vector<16x16xf32>
    %334 = arith.addf %331, %333 : vector<16x16xf32>
    %c664 = arith.constant 664 : index
    %c0_206 = arith.constant 0 : index
    %335 = vector.load %arg4[%c664, %c0_206] : memref<976x128xf32, #tpu.memory_space<vmem>>, vector<32x16xf32>
    %cst_207 = arith.constant dense<0.000000e+00> : vector<16x16xf32>
    %336 = tpu.matmul %296, %335, %cst_207 {dimension_numbers = #tpu.dot_dimension_numbers<[1], [0], [0], [1], [0, 0, 1, 1], [], []>} : vector<16x32xf32>, vector<32x16xf32>, vector<16x16xf32> -> vector<16x16xf32>
    %c962 = arith.constant 962 : index
    %c0_208 = arith.constant 0 : index
    %337 = vector.load %arg4[%c962, %c0_208] : memref<976x128xf32, #tpu.memory_space<vmem>>, vector<1x16xf32>
    %338 = vector.broadcast %337 : vector<1x16xf32> to vector<16x16xf32>
    %339 = arith.addf %336, %338 : vector<16x16xf32>
    %c696 = arith.constant 696 : index
    %c0_209 = arith.constant 0 : index
    %340 = vector.load %arg4[%c696, %c0_209] : memref<976x128xf32, #tpu.memory_space<vmem>>, vector<32x16xf32>
    %cst_210 = arith.constant dense<0.000000e+00> : vector<16x16xf32>
    %341 = tpu.matmul %296, %340, %cst_210 {dimension_numbers = #tpu.dot_dimension_numbers<[1], [0], [0], [1], [0, 0, 1, 1], [], []>} : vector<16x32xf32>, vector<32x16xf32>, vector<16x16xf32> -> vector<16x16xf32>
    %c963 = arith.constant 963 : index
    %c0_211 = arith.constant 0 : index
    %342 = vector.load %arg4[%c963, %c0_211] : memref<976x128xf32, #tpu.memory_space<vmem>>, vector<1x16xf32>
    %343 = vector.broadcast %342 : vector<1x16xf32> to vector<16x16xf32>
    %344 = arith.addf %341, %343 : vector<16x16xf32>
    %cst_212 = arith.constant dense<0.000000e+00> : vector<16x16xf32>
    %345 = tpu.matmul %334, %339, %cst_212 {dimension_numbers = #tpu.dot_dimension_numbers<[1], [1], [0], [0], [0, 0, 1, 0], [], []>} : vector<16x16xf32>, vector<16x16xf32>, vector<16x16xf32> -> vector<16x16xf32>
    %cst_213 = arith.constant 2.500000e-01 : f32
    %346 = vector.broadcast %cst_213 : f32 to vector<16x16xf32>
    %347 = arith.mulf %345, %346 : vector<16x16xf32>
    %348 = arith.addf %347, %155 : vector<16x16xf32>
    %cst_214 = arith.constant dense<0xFF800000> : vector<16xf32>
    %349 = vector.multi_reduction <maximumf>, %348, %cst_214 [1] : vector<16x16xf32> to vector<16xf32>
    %350 = vector.shape_cast %349 : vector<16xf32> to vector<16x1xf32>
    %351 = vector.broadcast %350 : vector<16x1xf32> to vector<16x16xf32>
    %352 = arith.subf %348, %351 : vector<16x16xf32>
    %353 = math.exp %352 : vector<16x16xf32>
    %cst_215 = arith.constant dense<0.000000e+00> : vector<16xf32>
    %354 = vector.multi_reduction <add>, %353, %cst_215 [1] : vector<16x16xf32> to vector<16xf32>
    %355 = vector.shape_cast %354 : vector<16xf32> to vector<16x1xf32>
    %356 = vector.broadcast %355 : vector<16x1xf32> to vector<16x16xf32>
    %357 = arith.divf %353, %356 : vector<16x16xf32>
    %cst_216 = arith.constant dense<0.000000e+00> : vector<16x16xf32>
    %358 = tpu.matmul %357, %344, %cst_216 {dimension_numbers = #tpu.dot_dimension_numbers<[1], [0], [0], [1], [0, 0, 1, 1], [], []>} : vector<16x16xf32>, vector<16x16xf32>, vector<16x16xf32> -> vector<16x16xf32>
    %c728 = arith.constant 728 : index
    %c0_217 = arith.constant 0 : index
    %359 = vector.load %arg4[%c728, %c0_217] : memref<976x128xf32, #tpu.memory_space<vmem>>, vector<16x32xf32>
    %cst_218 = arith.constant dense<0.000000e+00> : vector<16x32xf32>
    %360 = tpu.matmul %358, %359, %cst_218 {dimension_numbers = #tpu.dot_dimension_numbers<[1], [0], [0], [1], [0, 0, 1, 1], [], []>} : vector<16x16xf32>, vector<16x32xf32>, vector<16x32xf32> -> vector<16x32xf32>
    %361 = arith.addf %329, %360 : vector<16x32xf32>
    %c964 = arith.constant 964 : index
    %c0_219 = arith.constant 0 : index
    %362 = vector.load %arg4[%c964, %c0_219] : memref<976x128xf32, #tpu.memory_space<vmem>>, vector<1x32xf32>
    %363 = vector.broadcast %362 : vector<1x32xf32> to vector<16x32xf32>
    %364 = arith.addf %361, %363 : vector<16x32xf32>
    %365 = arith.addf %364, %296 : vector<16x32xf32>
    %c965 = arith.constant 965 : index
    %c0_220 = arith.constant 0 : index
    %366 = vector.load %arg4[%c965, %c0_220] : memref<976x128xf32, #tpu.memory_space<vmem>>, vector<1x32xf32>
    %c966 = arith.constant 966 : index
    %c0_221 = arith.constant 0 : index
    %367 = vector.load %arg4[%c966, %c0_221] : memref<976x128xf32, #tpu.memory_space<vmem>>, vector<1x32xf32>
    %cst_222 = arith.constant dense<0.000000e+00> : vector<16xf32>
    %368 = vector.multi_reduction <add>, %365, %cst_222 [1] : vector<16x32xf32> to vector<16xf32>
    %369 = vector.shape_cast %368 : vector<16xf32> to vector<16x1xf32>
    %cst_223 = arith.constant 3.200000e+01 : f32
    %370 = vector.broadcast %cst_223 : f32 to vector<16x1xf32>
    %371 = arith.divf %369, %370 : vector<16x1xf32>
    %372 = vector.broadcast %371 : vector<16x1xf32> to vector<16x32xf32>
    %373 = arith.subf %365, %372 : vector<16x32xf32>
    %374 = arith.mulf %373, %373 : vector<16x32xf32>
    %cst_224 = arith.constant dense<0.000000e+00> : vector<16xf32>
    %375 = vector.multi_reduction <add>, %374, %cst_224 [1] : vector<16x32xf32> to vector<16xf32>
    %376 = vector.shape_cast %375 : vector<16xf32> to vector<16x1xf32>
    %cst_225 = arith.constant 3.200000e+01 : f32
    %377 = vector.broadcast %cst_225 : f32 to vector<16x1xf32>
    %378 = arith.divf %376, %377 : vector<16x1xf32>
    %379 = vector.broadcast %371 : vector<16x1xf32> to vector<16x32xf32>
    %380 = arith.subf %365, %379 : vector<16x32xf32>
    %cst_226 = arith.constant 9.99999996E-13 : f32
    %381 = vector.broadcast %cst_226 : f32 to vector<16x1xf32>
    %382 = arith.addf %378, %381 : vector<16x1xf32>
    %383 = math.rsqrt %382 : vector<16x1xf32>
    %384 = vector.broadcast %383 : vector<16x1xf32> to vector<16x32xf32>
    %385 = arith.mulf %380, %384 : vector<16x32xf32>
    %386 = vector.broadcast %366 : vector<1x32xf32> to vector<16x32xf32>
    %387 = arith.mulf %385, %386 : vector<16x32xf32>
    %388 = vector.broadcast %367 : vector<1x32xf32> to vector<16x32xf32>
    %389 = arith.addf %387, %388 : vector<16x32xf32>
    %c744 = arith.constant 744 : index
    %c0_227 = arith.constant 0 : index
    %390 = vector.load %arg4[%c744, %c0_227] : memref<976x128xf32, #tpu.memory_space<vmem>>, vector<32x128xf32>
    %cst_228 = arith.constant dense<0.000000e+00> : vector<16x128xf32>
    %391 = tpu.matmul %389, %390, %cst_228 {dimension_numbers = #tpu.dot_dimension_numbers<[1], [0], [0], [1], [0, 0, 1, 1], [], []>} : vector<16x32xf32>, vector<32x128xf32>, vector<16x128xf32> -> vector<16x128xf32>
    %c967 = arith.constant 967 : index
    %c0_229 = arith.constant 0 : index
    %392 = vector.load %arg4[%c967, %c0_229] : memref<976x128xf32, #tpu.memory_space<vmem>>, vector<1x128xf32>
    %393 = vector.broadcast %392 : vector<1x128xf32> to vector<16x128xf32>
    %394 = arith.addf %391, %393 : vector<16x128xf32>
    %395 = arith.mulf %394, %394 : vector<16x128xf32>
    %396 = arith.mulf %394, %395 : vector<16x128xf32>
    %cst_230 = arith.constant 4.471500e-02 : f32
    %397 = vector.broadcast %cst_230 : f32 to vector<16x128xf32>
    %398 = arith.mulf %397, %396 : vector<16x128xf32>
    %399 = arith.addf %394, %398 : vector<16x128xf32>
    %cst_231 = arith.constant 0.797884583 : f32
    %400 = vector.broadcast %cst_231 : f32 to vector<16x128xf32>
    %401 = arith.mulf %400, %399 : vector<16x128xf32>
    %402 = math.tanh %401 : vector<16x128xf32>
    %cst_232 = arith.constant 1.000000e+00 : f32
    %403 = vector.broadcast %cst_232 : f32 to vector<16x128xf32>
    %404 = arith.addf %403, %402 : vector<16x128xf32>
    %cst_233 = arith.constant 5.000000e-01 : f32
    %405 = vector.broadcast %cst_233 : f32 to vector<16x128xf32>
    %406 = arith.mulf %405, %404 : vector<16x128xf32>
    %407 = arith.mulf %394, %406 : vector<16x128xf32>
    %c776 = arith.constant 776 : index
    %c0_234 = arith.constant 0 : index
    %408 = vector.load %arg4[%c776, %c0_234] : memref<976x128xf32, #tpu.memory_space<vmem>>, vector<128x32xf32>
    %cst_235 = arith.constant dense<0.000000e+00> : vector<16x32xf32>
    %409 = tpu.matmul %407, %408, %cst_235 {dimension_numbers = #tpu.dot_dimension_numbers<[1], [0], [0], [1], [0, 0, 1, 1], [], []>} : vector<16x128xf32>, vector<128x32xf32>, vector<16x32xf32> -> vector<16x32xf32>
    %c968 = arith.constant 968 : index
    %c0_236 = arith.constant 0 : index
    %410 = vector.load %arg4[%c968, %c0_236] : memref<976x128xf32, #tpu.memory_space<vmem>>, vector<1x32xf32>
    %411 = vector.broadcast %410 : vector<1x32xf32> to vector<16x32xf32>
    %412 = arith.addf %409, %411 : vector<16x32xf32>
    %413 = arith.addf %412, %389 : vector<16x32xf32>
    %c969 = arith.constant 969 : index
    %c0_237 = arith.constant 0 : index
    %414 = vector.load %arg4[%c969, %c0_237] : memref<976x128xf32, #tpu.memory_space<vmem>>, vector<1x32xf32>
    %c970 = arith.constant 970 : index
    %c0_238 = arith.constant 0 : index
    %415 = vector.load %arg4[%c970, %c0_238] : memref<976x128xf32, #tpu.memory_space<vmem>>, vector<1x32xf32>
    %cst_239 = arith.constant dense<0.000000e+00> : vector<16xf32>
    %416 = vector.multi_reduction <add>, %413, %cst_239 [1] : vector<16x32xf32> to vector<16xf32>
    %417 = vector.shape_cast %416 : vector<16xf32> to vector<16x1xf32>
    %cst_240 = arith.constant 3.200000e+01 : f32
    %418 = vector.broadcast %cst_240 : f32 to vector<16x1xf32>
    %419 = arith.divf %417, %418 : vector<16x1xf32>
    %420 = vector.broadcast %419 : vector<16x1xf32> to vector<16x32xf32>
    %421 = arith.subf %413, %420 : vector<16x32xf32>
    %422 = arith.mulf %421, %421 : vector<16x32xf32>
    %cst_241 = arith.constant dense<0.000000e+00> : vector<16xf32>
    %423 = vector.multi_reduction <add>, %422, %cst_241 [1] : vector<16x32xf32> to vector<16xf32>
    %424 = vector.shape_cast %423 : vector<16xf32> to vector<16x1xf32>
    %cst_242 = arith.constant 3.200000e+01 : f32
    %425 = vector.broadcast %cst_242 : f32 to vector<16x1xf32>
    %426 = arith.divf %424, %425 : vector<16x1xf32>
    %427 = vector.broadcast %419 : vector<16x1xf32> to vector<16x32xf32>
    %428 = arith.subf %413, %427 : vector<16x32xf32>
    %cst_243 = arith.constant 9.99999996E-13 : f32
    %429 = vector.broadcast %cst_243 : f32 to vector<16x1xf32>
    %430 = arith.addf %426, %429 : vector<16x1xf32>
    %431 = math.rsqrt %430 : vector<16x1xf32>
    %432 = vector.broadcast %431 : vector<16x1xf32> to vector<16x32xf32>
    %433 = arith.mulf %428, %432 : vector<16x32xf32>
    %434 = vector.broadcast %414 : vector<1x32xf32> to vector<16x32xf32>
    %435 = arith.mulf %433, %434 : vector<16x32xf32>
    %436 = vector.broadcast %415 : vector<1x32xf32> to vector<16x32xf32>
    %437 = arith.addf %435, %436 : vector<16x32xf32>
    %438 = vector.extract_strided_slice %437 {offsets = [0, 0], sizes = [1, 32], strides = [1, 1]} : vector<16x32xf32> to vector<1x32xf32>
    %c0_244 = arith.constant 0 : index
    %c0_245 = arith.constant 0 : index
    %439 = vector.load %arg8[%c0_244, %c0_245] : memref<2x32xf32, #tpu.memory_space<vmem>>, vector<1x32xf32>
    tpu.vector_store %arg8[%c0_244, %c0_245], %438 {strides = array<i32>} : memref<2x32xf32, #tpu.memory_space<vmem>>, vector<1x32xf32>,
    %440 = vector.extract_strided_slice %437 {offsets = [8, 0], sizes = [1, 32], strides = [1, 1]} : vector<16x32xf32> to vector<1x32xf32>
    %c1_246 = arith.constant 1 : index
    %c0_247 = arith.constant 0 : index
    %441 = vector.load %arg8[%c1_246, %c0_247] : memref<2x32xf32, #tpu.memory_space<vmem>>, vector<1x32xf32>
    tpu.vector_store %arg8[%c1_246, %c0_247], %440 {strides = array<i32>} : memref<2x32xf32, #tpu.memory_space<vmem>>, vector<1x32xf32>,
    %c0_248 = arith.constant 0 : index
    %c0_249 = arith.constant 0 : index
    %442 = vector.load %arg8[%c0_248, %c0_249] : memref<2x32xf32, #tpu.memory_space<vmem>>, vector<2x32xf32>
    %c904 = arith.constant 904 : index
    %c0_250 = arith.constant 0 : index
    %443 = vector.load %arg4[%c904, %c0_250] : memref<976x128xf32, #tpu.memory_space<vmem>>, vector<32x3xf32>
    %cst_251 = arith.constant dense<0.000000e+00> : vector<2x3xf32>
    %444 = tpu.matmul %442, %443, %cst_251 {dimension_numbers = #tpu.dot_dimension_numbers<[1], [0], [0], [1], [0, 0, 1, 1], [], []>} : vector<2x32xf32>, vector<32x3xf32>, vector<2x3xf32> -> vector<2x3xf32>
    %c0_252 = arith.constant 0 : index
    %c0_253 = arith.constant 0 : index
    %445 = vector.load %arg3[%c0_252, %c0_253] : memref<2x7xf32, #tpu.memory_space<vmem>>, vector<2x7xf32>
    %c936 = arith.constant 936 : index
    %c0_254 = arith.constant 0 : index
    %446 = vector.load %arg4[%c936, %c0_254] : memref<976x128xf32, #tpu.memory_space<vmem>>, vector<7x3xf32>
    %cst_255 = arith.constant dense<0.000000e+00> : vector<2x3xf32>
    %447 = tpu.matmul %445, %446, %cst_255 {dimension_numbers = #tpu.dot_dimension_numbers<[1], [0], [0], [1], [0, 0, 1, 1], [], []>} : vector<2x7xf32>, vector<7x3xf32>, vector<2x3xf32> -> vector<2x3xf32>
    %448 = arith.addf %444, %447 : vector<2x3xf32>
    %c971 = arith.constant 971 : index
    %c0_256 = arith.constant 0 : index
    %449 = vector.load %arg4[%c971, %c0_256] : memref<976x128xf32, #tpu.memory_space<vmem>>, vector<1x3xf32>
    %450 = vector.broadcast %449 : vector<1x3xf32> to vector<2x3xf32>
    %451 = arith.addf %448, %450 : vector<2x3xf32>
    %c0_257 = arith.constant 0 : index
    %c0_258 = arith.constant 0 : index
    %452 = vector.load %arg5[%c0_257, %c0_258] : memref<2x3xf32, #tpu.memory_space<vmem>>, vector<2x3xf32>
    tpu.vector_store %arg5[%c0_257, %c0_258], %451 {strides = array<i32>} : memref<2x3xf32, #tpu.memory_space<vmem>>, vector<2x3xf32>,
    return
  }
  func.func @transform_0(%arg0: i32, %arg1: memref<2x8xi32, #tpu.memory_space<smem>>) -> (i32, i32) {
    %c0_i32 = arith.constant 0 : i32
    %c0_i32_0 = arith.constant 0 : i32
    %c0_i32_1 = arith.constant 0 : i32
    return %c0_i32, %c0_i32_0 : i32, i32
  }
  func.func @transform_1(%arg0: i32, %arg1: memref<2x8xi32, #tpu.memory_space<smem>>) -> (i32, i32) {
    %c0_i32 = arith.constant 0 : i32
    %c0_i32_0 = arith.constant 0 : i32
    %c0_i32_1 = arith.constant 0 : i32
    return %c0_i32, %c0_i32_0 : i32, i32
  }
  func.func @transform_2(%arg0: i32, %arg1: memref<2x8xi32, #tpu.memory_space<smem>>) -> (i32, i32) {
    %c0_i32 = arith.constant 0 : i32
    %c0_i32_0 = arith.constant 0 : i32
    %c0_i32_1 = arith.constant 0 : i32
    return %c0_i32, %c0_i32_0 : i32, i32
  }
  func.func @transform_3(%arg0: i32, %arg1: memref<2x8xi32, #tpu.memory_space<smem>>) -> (i32, i32) {
    %c0_i32 = arith.constant 0 : i32
    %c0_i32_0 = arith.constant 0 : i32
    %c0_i32_1 = arith.constant 0 : i32
    return %c0_i32, %c0_i32_0 : i32, i32
  }
}

</mosaic_0001>

<llo_original>
// kernel: bert_multi_regressor.1
$region0: #{bert_multi_regressor.1}
  #allocation0 [shape = 'u32[]', space=smem, size = 0x4, offset = 0x4, fixed_abs, tag = 'smem constant byte address 0x4 - core index']
  #allocation1 [shape = 'u32[72,128]{1,0:T(1,128)}', space=vmem, size = 0x9000, scoped, tag = 'internal scratch']
  #allocation2 [shape = 'f32[16,32]{1,0:T(8,128)}', space=vmem, size = 0x2000, scoped, tag = 'scratch operand']
  #allocation3 [shape = 'f32[16,16]{1,0:T(8,128)}', space=vmem, size = 0x2000, scoped, tag = 'scratch operand']
  #allocation4 [shape = 'f32[2,32]{1,0:T(2,128)}', space=vmem, size = 0x400, scoped, tag = 'scratch operand']
  #allocation5 [shape = 's32[1]{0}', space=sflag, size = 0x4, scoped, tag = 'scoped memory for bert_multi_regressor.1']
  #allocation6 [shape = 'u8[1024]{0}', space=smem, size = 0x400, scoped, tag = 'prefetched SMEM operand 0']
  %s0 = inlined_call_operand.hbm [shape: s32[2,8], index: 0, kind: input, shape index: {}]
  %s1 = inlined_call_operand.hbm [shape: f32[2,8], index: 1, kind: input, shape index: {}]
  %s2 = inlined_call_operand.vmem [shape: f32[2,7], index: 2, kind: input, shape index: {}]
  %s3 = inlined_call_operand.hbm [shape: f32[976,128], index: 3, kind: input, shape index: {}]
  %s4 = inlined_call_operand.hbm [shape: f32[2,3], index: 4, kind: output, shape index: {}]
  %s5 = sld [smem:[#allocation0]]
  $region30: #{bert_multi_regressor.1} parent=0
    _
  %s7 = ssub.s32 1, %s5
  %s8 = scalar_select 0, %s7, %s5
  %s10 = sshll.u32 %s0, 4
  %s11 = int_to_ptr.hbm [resolvable:$true] %s10
  %13 = dma.hbm_to_smem %s11, 32, [#allocation6], [#allocation5]
  %15 = dma.done [#allocation5], 32
  %16 = sfence
  $region1: #{bert_multi_regressor.1} parent=0
    #allocation7 [shape = 'u8[1024]{0}', space=vmem, size = 0x400, scoped, tag = 'input window, operand 1, single buffered']
    #allocation8 [shape = 's32[1]{0}', space=sflag, size = 0x4, scoped, tag = 'scoped memory for bert_multi_regressor.1']
    #allocation9 [shape = 's32[1]{0}', space=sflag, size = 0x4, scoped, tag = 'scoped memory for bert_multi_regressor.1']
    #allocation10 [shape = 'u8[499712]{0}', space=vmem, size = 0x7a000, scoped, tag = 'input window, operand 3, single buffered']
    #allocation11 [shape = 's32[1]{0}', space=sflag, size = 0x4, scoped, tag = 'scoped memory for bert_multi_regressor.1']
    #allocation12 [shape = 'u8[1024]{0}', space=vmem, size = 0x400, scoped, tag = 'output window, operand 0, single buffered']
    %17 = vsyncpa [#allocation8], 0
    %18 = vsyncpa [#allocation11], 0
    %19 = vsyncpa [#allocation9], 0
    // Predicated region
    $region2: #{bert_multi_regressor.1} parent=1 // pred_check
      _
    $region3: #{bert_multi_regressor.1} parent=1 // pred_check_branch
      %21 = sbr.rel (0) target = $region5
    $region4: #{bert_multi_regressor.1} parent=1 // pred_region
      %23 = vsyncadd [#allocation8], 0
      %s25 = sshll.u32 %s1, 4
      %s26 = int_to_ptr.hbm [resolvable:$true] %s25
      %s27 = sshll.u32 [#allocation7], 4
      %s28 = int_to_ptr.vmem [resolvable:$true] %s27
      %30 = dma.hbm_to_vmem [thread:$0]  %s26, 32, %s28, [#allocation8]
    $region5: #{bert_multi_regressor.1} parent=1 // pred_fallthru
      _
    // Predicated region
    $region6: #{bert_multi_regressor.1} parent=1 // pred_check
      _
    $region7: #{bert_multi_regressor.1} parent=1 // pred_check_branch
      %32 = sbr.rel (0) target = $region9
    $region8: #{bert_multi_regressor.1} parent=1 // pred_region
      _
    $region9: #{bert_multi_regressor.1} parent=1 // pred_fallthru
      _
    // Predicated region
    $region10: #{bert_multi_regressor.1} parent=1 // pred_check
      _
    $region11: #{bert_multi_regressor.1} parent=1 // pred_check_branch
      %34 = sbr.rel (0) target = $region13
    $region12: #{bert_multi_regressor.1} parent=1 // pred_region
      %36 = vsyncadd [#allocation11], 0
      %s37 = sshll.u32 %s3, 4
      %s38 = int_to_ptr.hbm [resolvable:$true] %s37
      %s39 = sshll.u32 [#allocation10], 4
      %s40 = int_to_ptr.vmem [resolvable:$true] %s39
      %45 = dma.hbm_to_vmem [thread:$0]  %s38, 15616, %s40, [#allocation11], 128, 128, 8
    $region13: #{bert_multi_regressor.1} parent=1 // pred_fallthru
      _
    // Predicated region
    $region14: #{bert_multi_regressor.1} parent=1 // pred_check
      _
    $region15: #{bert_multi_regressor.1} parent=1 // pred_check_branch
      %47 = sbr.rel (0) target = $region17
    $region16: #{bert_multi_regressor.1} parent=1 // pred_region
      %49 = dma.done [#allocation8], 32
    $region17: #{bert_multi_regressor.1} parent=1 // pred_fallthru
      _
    // Predicated region
    $region18: #{bert_multi_regressor.1} parent=1 // pred_check
      _
    $region19: #{bert_multi_regressor.1} parent=1 // pred_check_branch
      %51 = sbr.rel (0) target = $region21
    $region20: #{bert_multi_regressor.1} parent=1 // pred_region
      %53 = dma.done [#allocation11], 15616
    $region21: #{bert_multi_regressor.1} parent=1 // pred_fallthru
      _
    %s54 = sld [smem:[#allocation6]]
    %s55 = scalar_lea.vmem [#allocation10], %s54
    %v56 = vld [vmem:[%s55] sm:$0x1]
    %v57 = vld [vmem:[#allocation10 + $0x68] sm:$0x1]
    %v58 = vadd.f32 %v56, %v57
    %vm59 = vcmask 253952
    %60 = vst.msk [vmem:[#allocation2] sm:$0x1] %vm59, %v58
    %s61 = sld [smem:[#allocation6 + $0x1]]
    %s62 = scalar_lea.vmem [#allocation10], %s61
    %v63 = vld [vmem:[%s62] sm:$0x1]
    %v64 = vld [vmem:[#allocation10 + $0x69] sm:$0x1]
    %v65 = vadd.f32 %v63, %v64
    %66 = vst.msk [vmem:[#allocation2 + $0x1] sm:$0x1] %vm59, %v65
    %s67 = sld [smem:[#allocation6 + $0x2]]
    %s68 = scalar_lea.vmem [#allocation10], %s67
    %v69 = vld [vmem:[%s68] sm:$0x1]
    %v70 = vld [vmem:[#allocation10 + $0x6a] sm:$0x1]
    %v71 = vadd.f32 %v69, %v70
    %72 = vst.msk [vmem:[#allocation2 + $0x2] sm:$0x1] %vm59, %v71
    %s73 = sld [smem:[#allocation6 + $0x3]]
    %s74 = scalar_lea.vmem [#allocation10], %s73
    %v75 = vld [vmem:[%s74] sm:$0x1]
    %v76 = vld [vmem:[#allocation10 + $0x6b] sm:$0x1]
    %v77 = vadd.f32 %v75, %v76
    %78 = vst.msk [vmem:[#allocation2 + $0x3] sm:$0x1] %vm59, %v77
    %s79 = sld [smem:[#allocation6 + $0x4]]
    %s80 = scalar_lea.vmem [#allocation10], %s79
    %v81 = vld [vmem:[%s80] sm:$0x1]
    %v82 = vld [vmem:[#allocation10 + $0x6c] sm:$0x1]
    %v83 = vadd.f32 %v81, %v82
    %84 = vst.msk [vmem:[#allocation2 + $0x4] sm:$0x1] %vm59, %v83
    %s85 = sld [smem:[#allocation6 + $0x5]]
    %s86 = scalar_lea.vmem [#allocation10], %s85
    %v87 = vld [vmem:[%s86] sm:$0x1]
    %v88 = vld [vmem:[#allocation10 + $0x6d] sm:$0x1]
    %v89 = vadd.f32 %v87, %v88
    %90 = vst.msk [vmem:[#allocation2 + $0x5] sm:$0x1] %vm59, %v89
    %s91 = sld [smem:[#allocation6 + $0x6]]
    %s92 = scalar_lea.vmem [#allocation10], %s91
    %v93 = vld [vmem:[%s92] sm:$0x1]
    %v94 = vld [vmem:[#allocation10 + $0x6e] sm:$0x1]
    %v95 = vadd.f32 %v93, %v94
    %96 = vst.msk [vmem:[#allocation2 + $0x6] sm:$0x1] %vm59, %v95
    %s97 = sld [smem:[#allocation6 + $0x7]]
    %s98 = scalar_lea.vmem [#allocation10], %s97
    %v99 = vld [vmem:[%s98] sm:$0x1]
    %v100 = vld [vmem:[#allocation10 + $0x6f] sm:$0x1]
    %v101 = vadd.f32 %v99, %v100
    %102 = vst.msk [vmem:[#allocation2 + $0x7] sm:$0x1] %vm59, %v101
    %s103 = sld [smem:[#allocation6 + $0x80]]
    %s104 = scalar_lea.vmem [#allocation10], %s103
    %v105 = vld [vmem:[%s104] sm:$0x1]
    %v106 = vld [vmem:[#allocation10 + $0x68] sm:$0x1]
    %v107 = vadd.f32 %v105, %v106
    %108 = vst.msk [vmem:[#allocation2 + $0x8] sm:$0x1] %vm59, %v107
    %s109 = sld [smem:[#allocation6 + $0x81]]
    %s110 = scalar_lea.vmem [#allocation10], %s109
    %v111 = vld [vmem:[%s110] sm:$0x1]
    %v112 = vld [vmem:[#allocation10 + $0x69] sm:$0x1]
    %v113 = vadd.f32 %v111, %v112
    %114 = vst.msk [vmem:[#allocation2 + $0x9] sm:$0x1] %vm59, %v113
    %s115 = sld [smem:[#allocation6 + $0x82]]
    %s116 = scalar_lea.vmem [#allocation10], %s115
    %v117 = vld [vmem:[%s116] sm:$0x1]
    %v118 = vld [vmem:[#allocation10 + $0x6a] sm:$0x1]
    %v119 = vadd.f32 %v117, %v118
    %120 = vst.msk [vmem:[#allocation2 + $0xa] sm:$0x1] %vm59, %v119
    %s121 = sld [smem:[#allocation6 + $0x83]]
    %s122 = scalar_lea.vmem [#allocation10], %s121
    %v123 = vld [vmem:[%s122] sm:$0x1]
    %v124 = vld [vmem:[#allocation10 + $0x6b] sm:$0x1]
    %v125 = vadd.f32 %v123, %v124
    %126 = vst.msk [vmem:[#allocation2 + $0xb] sm:$0x1] %vm59, %v125
    %s127 = sld [smem:[#allocation6 + $0x84]]
    %s128 = scalar_lea.vmem [#allocation10], %s127
    %v129 = vld [vmem:[%s128] sm:$0x1]
    %v130 = vld [vmem:[#allocation10 + $0x6c] sm:$0x1]
    %v131 = vadd.f32 %v129, %v130
    %132 = vst.msk [vmem:[#allocation2 + $0xc] sm:$0x1] %vm59, %v131
    %s133 = sld [smem:[#allocation6 + $0x85]]
    %s134 = scalar_lea.vmem [#allocation10], %s133
    %v135 = vld [vmem:[%s134] sm:$0x1]
    %v136 = vld [vmem:[#allocation10 + $0x6d] sm:$0x1]
    %v137 = vadd.f32 %v135, %v136
    %138 = vst.msk [vmem:[#allocation2 + $0xd] sm:$0x1] %vm59, %v137
    %s139 = sld [smem:[#allocation6 + $0x86]]
    %s140 = scalar_lea.vmem [#allocation10], %s139
    %v141 = vld [vmem:[%s140] sm:$0x1]
    %v142 = vld [vmem:[#allocation10 + $0x6e] sm:$0x1]
    %v143 = vadd.f32 %v141, %v142
    %144 = vst.msk [vmem:[#allocation2 + $0xe] sm:$0x1] %vm59, %v143
    %s145 = sld [smem:[#allocation6 + $0x87]]
    %s146 = scalar_lea.vmem [#allocation10], %s145
    %v147 = vld [vmem:[%s146] sm:$0x1]
    %v148 = vld [vmem:[#allocation10 + $0x6f] sm:$0x1]
    %v149 = vadd.f32 %v147, %v148
    %150 = vst.msk [vmem:[#allocation2 + $0xf] sm:$0x1] %vm59, %v149
    %v151 = vld [vmem:[#allocation2] sm:$0xff]
    %v152 = vld [vmem:[#allocation2 + $0x8] sm:$0xff]
    %v153 = vld [vmem:[#allocation10 + $0x3af] sm:$0x1]
    %v154 = vld [vmem:[#allocation10 + $0x3b0] sm:$0x1]
    %vm155 = vcmask 261120
    %v156 = vsel %vm155, %v151, 0.0
    %157 = vadd.xlane.f32.xlu0 %v156
    %v158 = vpop.xlane.xlu0 %157
    %v159 = vsel %vm155, %v152, 0.0
    %160 = vadd.xlane.f32.xlu0 %v159
    %v161 = vpop.xlane.xlu0 %160
    %v162 = vrcp.pop 32.0
    %v163 = vmul.f32 32.0, %v162
    %v164 = vsub.f32 1.0, %v163
    %v165 = vmul.f32 %v162, %v164
    %v166 = vadd.f32 %v162, %v165
    %vm167 = vweird.f32 %v162
    %v168 = vsel %vm167, %v162, %v166
    %v169 = vmul.f32 %v158, %v168
    %v170 = vmul.f32 %v161, %v168
    %v171 = vsub.f32 %v151, %v169
    %v172 = vsub.f32 %v152, %v170
    %v173 = vmul.f32 %v171, %v171
    %v174 = vmul.f32 %v172, %v172
    %v175 = vsel %vm155, %v173, 0.0
    %176 = vadd.xlane.f32.xlu0 %v175
    %v177 = vpop.xlane.xlu0 %176
    %v178 = vsel %vm155, %v174, 0.0
    %179 = vadd.xlane.f32.xlu0 %v178
    %v180 = vpop.xlane.xlu0 %179
    %v181 = vmul.f32 %v177, %v168
    %v182 = vmul.f32 %v180, %v168
    %v183 = vadd.f32 %v181, 1e-12
    %v184 = vadd.f32 %v182, 1e-12
    %v185 = vrsqrt.pop %v183
    %v186 = vmul.f32 %v185, %v183
    %v187 = vmul.f32 %v186, %v185
    %v188 = vmul.f32 0.5, %v187
    %v189 = vsub.f32 1.5, %v188
    %v190 = vmul.f32 %v185, %v189
    %vm191 = vweird.f32 %v183
    %vm192 = vweird.f32 %v185
    %vm193 = vmor %vm191, %vm192
    %v194 = vsel %vm193, %v185, %v190
    %v195 = vrsqrt.pop %v184
    %v196 = vmul.f32 %v195, %v184
    %v197 = vmul.f32 %v196, %v195
    %v198 = vmul.f32 0.5, %v197
    %v199 = vsub.f32 1.5, %v198
    %v200 = vmul.f32 %v195, %v199
    %vm201 = vweird.f32 %v184
    %vm202 = vweird.f32 %v195
    %vm203 = vmor %vm201, %vm202
    %v204 = vsel %vm203, %v195, %v200
    %v205 = vmul.f32 %v171, %v194
    %v206 = vmul.f32 %v172, %v204
    %v207 = vperm.slane %v153, 0
    %v208 = vmul.f32 %v205, %v207
    %v209 = vmul.f32 %v206, %v207
    %v210 = vperm.slane %v154, 0
    %v211 = vadd.f32 %v208, %v210
    %v212 = vadd.f32 %v209, %v210
    %vm213 = vcmask 130048
    %214 = vst.msk [vmem:[#allocation3] sm:$0xff] %vm213, -1e+09
    %215 = vst.msk [vmem:[#allocation3 + $0x8] sm:$0xff] %vm213, -1e+09
    %v216 = vld [vmem:[#allocation7] sm:$0x1]
    %v217 = vsub.f32 %v216, 1.0
    %v218 = vmul.f32 %v217, 1e+09
    %v219 = vperm.slane %v218, 0
    %vm220 = vcmask 64512
    %221 = vst.msk [vmem:[#allocation3] sm:$0xff] %vm220, %v219
    %v222 = vld [vmem:[#allocation7 + $0x1] sm:$0x1]
    %v223 = vsub.f32 %v222, 1.0
    %v224 = vmul.f32 %v223, 1e+09
    %v225 = vperm.slane %v224, 0
    %227 = vrot.lane.b32.xlu0 %v225, 8
    %v228 = vpop.permute.xlu0 %227
    %vm230 = vcmask 130112
    %231 = vst.msk [vmem:[#allocation3 + $0x8] sm:$0xff] %vm230, %v228
    %v232 = vld [vmem:[#allocation3] sm:$0xff]
    %v233 = vld [vmem:[#allocation3 + $0x8] sm:$0xff]
    %v234 = vld [vmem:[#allocation10 + $0x88] sm:$0xff]
    %v235 = vld [vmem:[#allocation10 + $0x90] sm:$0xff]
    %v236 = vld [vmem:[#allocation10 + $0x98] sm:$0xff]
    %v237 = vld [vmem:[#allocation10 + $0xa0] sm:$0xff]
    %v238 = vld [vmem:[#allocation10 + $0x3b1] sm:$0x1]
    %v239 = vperm.slane %v238, 0
    %v241 = vsel %vm155, %v211, 0
    %v244 = vsel %vm155, %v212, 0
    %246 = vmatpush.msra.mxu0 0.0
    %247 = vmatpush.msra.mxu0 0.0
    %248 = vmatpush.msra.mxu0 0.0
    %249 = vmatpush.msra.mxu0 0.0
    %250 = vmatpush.msra.mxu0 0.0
    %251 = vmatpush.msra.mxu0 0.0
    %252 = vmatpush.msra.mxu0 0.0
    %253 = vmatpush.msra.mxu0 0.0
    %254 = vmatpush.msra.mxu0 0.0
    %255 = vmatpush.msra.mxu0 0.0
    %256 = vmatpush.msra.mxu0 0.0
    %257 = vmatpush.msra.mxu0 0.0
    %258 = vmatpush.msra.mxu0 %v237
    %259 = vmatpush.msra.mxu0 %v236
    %260 = vmatpush.msra.mxu0 %v235
    %261 = vmatpush.msra.mxu0 %v234
    %262 = vmatmul.f32.gmra.mxu0 %v241
    %v263 = vpop.f32.mrf.mxu0
    %v264 = vadd.f32 %v239, %v263
    %265 = vmatmul.f32.gmra.mxu0 %v244
    %v266 = vpop.f32.mrf.mxu0
    %v267 = vadd.f32 %v239, %v266
    %268 = vdwg.mxu0
    %v269 = vld [vmem:[#allocation10 + $0xa8] sm:$0xff]
    %v270 = vld [vmem:[#allocation10 + $0xb0] sm:$0xff]
    %v271 = vld [vmem:[#allocation10 + $0xb8] sm:$0xff]
    %v272 = vld [vmem:[#allocation10 + $0xc0] sm:$0xff]
    %v273 = vld [vmem:[#allocation10 + $0x3b2] sm:$0x1]
    %v274 = vperm.slane %v273, 0
    %275 = vmatpush.msra.mxu0 0.0
    %276 = vmatpush.msra.mxu0 0.0
    %277 = vmatpush.msra.mxu0 0.0
    %278 = vmatpush.msra.mxu0 0.0
    %279 = vmatpush.msra.mxu0 0.0
    %280 = vmatpush.msra.mxu0 0.0
    %281 = vmatpush.msra.mxu0 0.0
    %282 = vmatpush.msra.mxu0 0.0
    %283 = vmatpush.msra.mxu0 0.0
    %284 = vmatpush.msra.mxu0 0.0
    %285 = vmatpush.msra.mxu0 0.0
    %286 = vmatpush.msra.mxu0 0.0
    %287 = vmatpush.msra.mxu0 %v272
    %288 = vmatpush.msra.mxu0 %v271
    %289 = vmatpush.msra.mxu0 %v270
    %290 = vmatpush.msra.mxu0 %v269
    %291 = vmatmul.f32.gmra.mxu0 %v241
    %v292 = vpop.f32.mrf.mxu0
    %v293 = vadd.f32 %v274, %v292
    %294 = vmatmul.f32.gmra.mxu0 %v244
    %v295 = vpop.f32.mrf.mxu0
    %v296 = vadd.f32 %v274, %v295
    %297 = vdwg.mxu0
    %v298 = vld [vmem:[#allocation10 + $0xc8] sm:$0xff]
    %v299 = vld [vmem:[#allocation10 + $0xd0] sm:$0xff]
    %v300 = vld [vmem:[#allocation10 + $0xd8] sm:$0xff]
    %v301 = vld [vmem:[#allocation10 + $0xe0] sm:$0xff]
    %v302 = vld [vmem:[#allocation10 + $0x3b3] sm:$0x1]
    %v303 = vperm.slane %v302, 0
    %304 = vmatpush.msra.mxu0 0.0
    %305 = vmatpush.msra.mxu0 0.0
    %306 = vmatpush.msra.mxu0 0.0
    %307 = vmatpush.msra.mxu0 0.0
    %308 = vmatpush.msra.mxu0 0.0
    %309 = vmatpush.msra.mxu0 0.0
    %310 = vmatpush.msra.mxu0 0.0
    %311 = vmatpush.msra.mxu0 0.0
    %312 = vmatpush.msra.mxu0 0.0
    %313 = vmatpush.msra.mxu0 0.0
    %314 = vmatpush.msra.mxu0 0.0
    %315 = vmatpush.msra.mxu0 0.0
    %316 = vmatpush.msra.mxu0 %v301
    %317 = vmatpush.msra.mxu0 %v300
    %318 = vmatpush.msra.mxu0 %v299
    %319 = vmatpush.msra.mxu0 %v298
    %320 = vmatmul.f32.gmra.mxu0 %v241
    %v321 = vpop.f32.mrf.mxu0
    %v322 = vadd.f32 %v303, %v321
    %323 = vmatmul.f32.gmra.mxu0 %v244
    %v324 = vpop.f32.mrf.mxu0
    %v325 = vadd.f32 %v303, %v324
    %326 = vdwg.mxu0
    %v328 = vsel %vm213, %v264, 0
    %v331 = vsel %vm213, %v267, 0
    %v334 = vsel %vm213, %v293, 0
    %v337 = vsel %vm213, %v296, 0
    %339 = vmatpush.xpose.msra.mxu0 0.0
    %340 = vmatpush.xpose.msra.mxu0 0.0
    %341 = vmatpush.xpose.msra.mxu0 0.0
    %342 = vmatpush.xpose.msra.mxu0 0.0
    %343 = vmatpush.xpose.msra.mxu0 0.0
    %344 = vmatpush.xpose.msra.mxu0 0.0
    %345 = vmatpush.xpose.msra.mxu0 0.0
    %346 = vmatpush.xpose.msra.mxu0 0.0
    %347 = vmatpush.xpose.msra.mxu0 0.0
    %348 = vmatpush.xpose.msra.mxu0 0.0
    %349 = vmatpush.xpose.msra.mxu0 0.0
    %350 = vmatpush.xpose.msra.mxu0 0.0
    %351 = vmatpush.xpose.msra.mxu0 0.0
    %352 = vmatpush.xpose.msra.mxu0 0.0
    %353 = vmatpush.xpose.msra.mxu0 %v337
    %354 = vmatpush.xpose.msra.mxu0 %v334
    %355 = vmatmul.f32.gmra.mxu0 %v328
    %v356 = vpop.f32.mrf.mxu0
    %v357 = vadd.f32 0.0, %v356
    %358 = vmatmul.f32.gmra.mxu0 %v331
    %v359 = vpop.f32.mrf.mxu0
    %v360 = vadd.f32 0.0, %v359
    %361 = vdwg.mxu0
    %v362 = vmul.f32 %v357, 0.25
    %v363 = vmul.f32 %v360, 0.25
    %v364 = vadd.f32 %v362, %v232
    %v365 = vadd.f32 %v363, %v233
    %v366 = vsel %vm213, %v364, -inf
    %367 = vmax.xlane.f32.xlu0 %v366
    %v368 = vpop.xlane.xlu0 %367
    %v369 = vsel %vm213, %v365, -inf
    %370 = vmax.xlane.f32.xlu0 %v369
    %v371 = vpop.xlane.xlu0 %370
    %v372 = vsub.f32 %v364, %v368
    %v373 = vsub.f32 %v365, %v371
    %v374 = vmul.f32 %v372, 1.442695
    %v375 = vpow.pop %v374
    %v376 = vmul.f32 %v373, 1.442695
    %v377 = vpow.pop %v376
    %v378 = vsel %vm213, %v375, 0.0
    %379 = vadd.xlane.f32.xlu0 %v378
    %v380 = vpop.xlane.xlu0 %379
    %v381 = vsel %vm213, %v377, 0.0
    %382 = vadd.xlane.f32.xlu0 %v381
    %v383 = vpop.xlane.xlu0 %382
    %v384 = vrcp.pop %v380
    %v385 = vmul.f32 %v380, %v384
    %v386 = vsub.f32 1.0, %v385
    %v387 = vmul.f32 %v384, %v386
    %v388 = vadd.f32 %v384, %v387
    %vm389 = vweird.f32 %v380
    %vm390 = vweird.f32 %v384
    %vm391 = vmor %vm389, %vm390
    %v392 = vsel %vm391, %v384, %v388
    %v393 = vand.u32 2147483647, %v380
    %vm394 = vcmp.eq.f32.partialorder %v393, 8.507059e+37
    %v395 = vand.u32 %v380, 2147483648
    %v396 = vor.u32 1.1754944e-38, %v395
    %v397 = vsel %vm394, %v396, %v392
    %v398 = vmul.f32 %v375, %v397
    %v399 = vrcp.pop %v383
    %v400 = vmul.f32 %v383, %v399
    %v401 = vsub.f32 1.0, %v400
    %v402 = vmul.f32 %v399, %v401
    %v403 = vadd.f32 %v399, %v402
    %vm404 = vweird.f32 %v383
    %vm405 = vweird.f32 %v399
    %vm406 = vmor %vm404, %vm405
    %v407 = vsel %vm406, %v399, %v403
    %v408 = vand.u32 2147483647, %v383
    %vm409 = vcmp.eq.f32.partialorder %v408, 8.507059e+37
    %v410 = vand.u32 %v383, 2147483648
    %v411 = vor.u32 1.1754944e-38, %v410
    %v412 = vsel %vm409, %v411, %v407
    %v413 = vmul.f32 %v377, %v412
    %v415 = vsel %vm213, %v398, 0
    %v418 = vsel %vm213, %v413, 0
    %420 = vmatpush.msra.mxu0 0.0
    %421 = vmatpush.msra.mxu0 0.0
    %422 = vmatpush.msra.mxu0 0.0
    %423 = vmatpush.msra.mxu0 0.0
    %424 = vmatpush.msra.mxu0 0.0
    %425 = vmatpush.msra.mxu0 0.0
    %426 = vmatpush.msra.mxu0 0.0
    %427 = vmatpush.msra.mxu0 0.0
    %428 = vmatpush.msra.mxu0 0.0
    %429 = vmatpush.msra.mxu0 0.0
    %430 = vmatpush.msra.mxu0 0.0
    %431 = vmatpush.msra.mxu0 0.0
    %432 = vmatpush.msra.mxu0 0.0
    %433 = vmatpush.msra.mxu0 0.0
    %434 = vmatpush.msra.mxu0 %v325
    %435 = vmatpush.msra.mxu0 %v322
    %436 = vmatmul.f32.gmra.mxu0 %v415
    %v437 = vpop.f32.mrf.mxu0
    %v438 = vadd.f32 0.0, %v437
    %439 = vmatmul.f32.gmra.mxu0 %v418
    %v440 = vpop.f32.mrf.mxu0
    %v441 = vadd.f32 0.0, %v440
    %442 = vdwg.mxu0
    %v443 = vld [vmem:[#allocation10 + $0xe8] sm:$0xff]
    %v444 = vld [vmem:[#allocation10 + $0xf0] sm:$0xff]
    %v445 = vld [vmem:[#allocation10 + $0xf8] sm:$0xff]
    %v446 = vld [vmem:[#allocation10 + $0x100] sm:$0xff]
    %v447 = vld [vmem:[#allocation10 + $0x108] sm:$0xff]
    %v448 = vld [vmem:[#allocation10 + $0x110] sm:$0xff]
    %v449 = vld [vmem:[#allocation10 + $0x3b4] sm:$0x1]
    %v450 = vperm.slane %v449, 0
    %451 = vmatpush.msra.mxu0 0.0
    %452 = vmatpush.msra.mxu0 0.0
    %453 = vmatpush.msra.mxu0 0.0
    %454 = vmatpush.msra.mxu0 0.0
    %455 = vmatpush.msra.mxu0 0.0
    %456 = vmatpush.msra.mxu0 0.0
    %457 = vmatpush.msra.mxu0 0.0
    %458 = vmatpush.msra.mxu0 0.0
    %459 = vmatpush.msra.mxu0 0.0
    %460 = vmatpush.msra.mxu0 0.0
    %461 = vmatpush.msra.mxu0 0.0
    %462 = vmatpush.msra.mxu0 0.0
    %463 = vmatpush.msra.mxu0 %v448
    %464 = vmatpush.msra.mxu0 %v447
    %465 = vmatpush.msra.mxu0 %v446
    %466 = vmatpush.msra.mxu0 %v445
    %467 = vmatmul.f32.gmra.mxu0 %v241
    %v468 = vpop.f32.mrf.mxu0
    %v469 = vadd.f32 %v450, %v468
    %470 = vmatmul.f32.gmra.mxu0 %v244
    %v471 = vpop.f32.mrf.mxu0
    %v472 = vadd.f32 %v450, %v471
    %473 = vdwg.mxu0
    %v474 = vld [vmem:[#allocation10 + $0x118] sm:$0xff]
    %v475 = vld [vmem:[#allocation10 + $0x120] sm:$0xff]
    %v476 = vld [vmem:[#allocation10 + $0x128] sm:$0xff]
    %v477 = vld [vmem:[#allocation10 + $0x130] sm:$0xff]
    %v478 = vld [vmem:[#allocation10 + $0x3b5] sm:$0x1]
    %v479 = vperm.slane %v478, 0
    %480 = vmatpush.msra.mxu0 0.0
    %481 = vmatpush.msra.mxu0 0.0
    %482 = vmatpush.msra.mxu0 0.0
    %483 = vmatpush.msra.mxu0 0.0
    %484 = vmatpush.msra.mxu0 0.0
    %485 = vmatpush.msra.mxu0 0.0
    %486 = vmatpush.msra.mxu0 0.0
    %487 = vmatpush.msra.mxu0 0.0
    %488 = vmatpush.msra.mxu0 0.0
    %489 = vmatpush.msra.mxu0 0.0
    %490 = vmatpush.msra.mxu0 0.0
    %491 = vmatpush.msra.mxu0 0.0
    %492 = vmatpush.msra.mxu0 %v477
    %493 = vmatpush.msra.mxu0 %v476
    %494 = vmatpush.msra.mxu0 %v475
    %495 = vmatpush.msra.mxu0 %v474
    %496 = vmatmul.f32.gmra.mxu0 %v241
    %v497 = vpop.f32.mrf.mxu0
    %v498 = vadd.f32 %v479, %v497
    %499 = vmatmul.f32.gmra.mxu0 %v244
    %v500 = vpop.f32.mrf.mxu0
    %v501 = vadd.f32 %v479, %v500
    %502 = vdwg.mxu0
    %v503 = vld [vmem:[#allocation10 + $0x138] sm:$0xff]
    %v504 = vld [vmem:[#allocation10 + $0x140] sm:$0xff]
    %v505 = vld [vmem:[#allocation10 + $0x148] sm:$0xff]
    %v506 = vld [vmem:[#allocation10 + $0x150] sm:$0xff]
    %v507 = vld [vmem:[#allocation10 + $0x3b6] sm:$0x1]
    %v508 = vperm.slane %v507, 0
    %509 = vmatpush.msra.mxu0 0.0
    %510 = vmatpush.msra.mxu0 0.0
    %511 = vmatpush.msra.mxu0 0.0
    %512 = vmatpush.msra.mxu0 0.0
    %513 = vmatpush.msra.mxu0 0.0
    %514 = vmatpush.msra.mxu0 0.0
    %515 = vmatpush.msra.mxu0 0.0
    %516 = vmatpush.msra.mxu0 0.0
    %517 = vmatpush.msra.mxu0 0.0
    %518 = vmatpush.msra.mxu0 0.0
    %519 = vmatpush.msra.mxu0 0.0
    %520 = vmatpush.msra.mxu0 0.0
    %521 = vmatpush.msra.mxu0 %v506
    %522 = vmatpush.msra.mxu0 %v505
    %523 = vmatpush.msra.mxu0 %v504
    %524 = vmatpush.msra.mxu0 %v503
    %525 = vmatmul.f32.gmra.mxu0 %v241
    %v526 = vpop.f32.mrf.mxu0
    %v527 = vadd.f32 %v508, %v526
    %528 = vmatmul.f32.gmra.mxu0 %v244
    %v529 = vpop.f32.mrf.mxu0
    %v530 = vadd.f32 %v508, %v529
    %531 = vdwg.mxu0
    %v533 = vsel %vm213, %v469, 0
    %v536 = vsel %vm213, %v472, 0
    %v539 = vsel %vm213, %v498, 0
    %v542 = vsel %vm213, %v501, 0
    %544 = vmatpush.xpose.msra.mxu0 0.0
    %545 = vmatpush.xpose.msra.mxu0 0.0
    %546 = vmatpush.xpose.msra.mxu0 0.0
    %547 = vmatpush.xpose.msra.mxu0 0.0
    %548 = vmatpush.xpose.msra.mxu0 0.0
    %549 = vmatpush.xpose.msra.mxu0 0.0
    %550 = vmatpush.xpose.msra.mxu0 0.0
    %551 = vmatpush.xpose.msra.mxu0 0.0
    %552 = vmatpush.xpose.msra.mxu0 0.0
    %553 = vmatpush.xpose.msra.mxu0 0.0
    %554 = vmatpush.xpose.msra.mxu0 0.0
    %555 = vmatpush.xpose.msra.mxu0 0.0
    %556 = vmatpush.xpose.msra.mxu0 0.0
    %557 = vmatpush.xpose.msra.mxu0 0.0
    %558 = vmatpush.xpose.msra.mxu0 %v542
    %559 = vmatpush.xpose.msra.mxu0 %v539
    %560 = vmatmul.f32.gmra.mxu0 %v533
    %v561 = vpop.f32.mrf.mxu0
    %v562 = vadd.f32 0.0, %v561
    %563 = vmatmul.f32.gmra.mxu0 %v536
    %v564 = vpop.f32.mrf.mxu0
    %v565 = vadd.f32 0.0, %v564
    %566 = vdwg.mxu0
    %v567 = vmul.f32 %v562, 0.25
    %v568 = vmul.f32 %v565, 0.25
    %v569 = vadd.f32 %v567, %v232
    %v570 = vadd.f32 %v568, %v233
    %v571 = vsel %vm213, %v569, -inf
    %572 = vmax.xlane.f32.xlu0 %v571
    %v573 = vpop.xlane.xlu0 %572
    %v574 = vsel %vm213, %v570, -inf
    %575 = vmax.xlane.f32.xlu0 %v574
    %v576 = vpop.xlane.xlu0 %575
    %v577 = vsub.f32 %v569, %v573
    %v578 = vsub.f32 %v570, %v576
    %v579 = vmul.f32 %v577, 1.442695
    %v580 = vpow.pop %v579
    %v581 = vmul.f32 %v578, 1.442695
    %v582 = vpow.pop %v581
    %v583 = vsel %vm213, %v580, 0.0
    %584 = vadd.xlane.f32.xlu0 %v583
    %v585 = vpop.xlane.xlu0 %584
    %v586 = vsel %vm213, %v582, 0.0
    %587 = vadd.xlane.f32.xlu0 %v586
    %v588 = vpop.xlane.xlu0 %587
    %v589 = vrcp.pop %v585
    %v590 = vmul.f32 %v585, %v589
    %v591 = vsub.f32 1.0, %v590
    %v592 = vmul.f32 %v589, %v591
    %v593 = vadd.f32 %v589, %v592
    %vm594 = vweird.f32 %v585
    %vm595 = vweird.f32 %v589
    %vm596 = vmor %vm594, %vm595
    %v597 = vsel %vm596, %v589, %v593
    %v598 = vand.u32 2147483647, %v585
    %vm599 = vcmp.eq.f32.partialorder %v598, 8.507059e+37
    %v600 = vand.u32 %v585, 2147483648
    %v601 = vor.u32 1.1754944e-38, %v600
    %v602 = vsel %vm599, %v601, %v597
    %v603 = vmul.f32 %v580, %v602
    %v604 = vrcp.pop %v588
    %v605 = vmul.f32 %v588, %v604
    %v606 = vsub.f32 1.0, %v605
    %v607 = vmul.f32 %v604, %v606
    %v608 = vadd.f32 %v604, %v607
    %vm609 = vweird.f32 %v588
    %vm610 = vweird.f32 %v604
    %vm611 = vmor %vm609, %vm610
    %v612 = vsel %vm611, %v604, %v608
    %v613 = vand.u32 2147483647, %v588
    %vm614 = vcmp.eq.f32.partialorder %v613, 8.507059e+37
    %v615 = vand.u32 %v588, 2147483648
    %v616 = vor.u32 1.1754944e-38, %v615
    %v617 = vsel %vm614, %v616, %v612
    %v618 = vmul.f32 %v582, %v617
    %v620 = vsel %vm213, %v603, 0
    %v623 = vsel %vm213, %v618, 0
    %625 = vmatpush.msra.mxu0 0.0
    %626 = vmatpush.msra.mxu0 0.0
    %627 = vmatpush.msra.mxu0 0.0
    %628 = vmatpush.msra.mxu0 0.0
    %629 = vmatpush.msra.mxu0 0.0
    %630 = vmatpush.msra.mxu0 0.0
    %631 = vmatpush.msra.mxu0 0.0
    %632 = vmatpush.msra.mxu0 0.0
    %633 = vmatpush.msra.mxu0 0.0
    %634 = vmatpush.msra.mxu0 0.0
    %635 = vmatpush.msra.mxu0 0.0
    %636 = vmatpush.msra.mxu0 0.0
    %637 = vmatpush.msra.mxu0 0.0
    %638 = vmatpush.msra.mxu0 0.0
    %639 = vmatpush.msra.mxu0 %v530
    %640 = vmatpush.msra.mxu0 %v527
    %641 = vmatmul.f32.gmra.mxu0 %v620
    %v642 = vpop.f32.mrf.mxu0
    %v643 = vadd.f32 0.0, %v642
    %644 = vmatmul.f32.gmra.mxu0 %v623
    %v645 = vpop.f32.mrf.mxu0
    %v646 = vadd.f32 0.0, %v645
    %647 = vdwg.mxu0
    %v648 = vld [vmem:[#allocation10 + $0x158] sm:$0xff]
    %v649 = vld [vmem:[#allocation10 + $0x160] sm:$0xff]
    %v651 = vsel %vm213, %v643, 0
    %v654 = vsel %vm213, %v646, 0
    %656 = vmatpush.msra.mxu0 0.0
    %657 = vmatpush.msra.mxu0 0.0
    %658 = vmatpush.msra.mxu0 0.0
    %659 = vmatpush.msra.mxu0 0.0
    %660 = vmatpush.msra.mxu0 0.0
    %661 = vmatpush.msra.mxu0 0.0
    %662 = vmatpush.msra.mxu0 0.0
    %663 = vmatpush.msra.mxu0 0.0
    %664 = vmatpush.msra.mxu0 0.0
    %665 = vmatpush.msra.mxu0 0.0
    %666 = vmatpush.msra.mxu0 0.0
    %667 = vmatpush.msra.mxu0 0.0
    %668 = vmatpush.msra.mxu0 0.0
    %669 = vmatpush.msra.mxu0 0.0
    %670 = vmatpush.msra.mxu0 %v649
    %671 = vmatpush.msra.mxu0 %v648
    %672 = vmatmul.f32.gmra.mxu0 %v651
    %v673 = vpop.f32.mrf.mxu0
    %v674 = vadd.f32 0.0, %v673
    %675 = vmatmul.f32.gmra.mxu0 %v654
    %v676 = vpop.f32.mrf.mxu0
    %v677 = vadd.f32 0.0, %v676
    %678 = vdwg.mxu0
    %v680 = vsel %vm213, %v438, 0
    %v683 = vsel %vm213, %v441, 0
    %685 = vmatpush.msra.mxu0 0.0
    %686 = vmatpush.msra.mxu0 0.0
    %687 = vmatpush.msra.mxu0 0.0
    %688 = vmatpush.msra.mxu0 0.0
    %689 = vmatpush.msra.mxu0 0.0
    %690 = vmatpush.msra.mxu0 0.0
    %691 = vmatpush.msra.mxu0 0.0
    %692 = vmatpush.msra.mxu0 0.0
    %693 = vmatpush.msra.mxu0 0.0
    %694 = vmatpush.msra.mxu0 0.0
    %695 = vmatpush.msra.mxu0 0.0
    %696 = vmatpush.msra.mxu0 0.0
    %697 = vmatpush.msra.mxu0 0.0
    %698 = vmatpush.msra.mxu0 0.0
    %699 = vmatpush.msra.mxu0 %v444
    %700 = vmatpush.msra.mxu0 %v443
    %701 = vmatmul.f32.gmra.mxu0 %v680
    %v702 = vpop.f32.mrf.mxu0
    %v703 = vadd.f32 %v674, %v702
    %704 = vmatmul.f32.gmra.mxu0 %v683
    %v705 = vpop.f32.mrf.mxu0
    %v706 = vadd.f32 %v677, %v705
    %707 = vdwg.mxu0
    %v708 = vld [vmem:[#allocation10 + $0x3b7] sm:$0x1]
    %v709 = vperm.slane %v708, 0
    %v710 = vadd.f32 %v703, %v709
    %v711 = vadd.f32 %v706, %v709
    %v712 = vadd.f32 %v710, %v211
    %v713 = vadd.f32 %v711, %v212
    %v714 = vld [vmem:[#allocation10 + $0x3b8] sm:$0x1]
    %v715 = vld [vmem:[#allocation10 + $0x3b9] sm:$0x1]
    %v716 = vsel %vm155, %v712, 0.0
    %717 = vadd.xlane.f32.xlu0 %v716
    %v718 = vpop.xlane.xlu0 %717
    %v719 = vsel %vm155, %v713, 0.0
    %720 = vadd.xlane.f32.xlu0 %v719
    %v721 = vpop.xlane.xlu0 %720
    %v722 = vmul.f32 %v718, %v168
    %v723 = vmul.f32 %v721, %v168
    %v724 = vsub.f32 %v712, %v722
    %v725 = vsub.f32 %v713, %v723
    %v726 = vmul.f32 %v724, %v724
    %v727 = vmul.f32 %v725, %v725
    %v728 = vsel %vm155, %v726, 0.0
    %729 = vadd.xlane.f32.xlu0 %v728
    %v730 = vpop.xlane.xlu0 %729
    %v731 = vsel %vm155, %v727, 0.0
    %732 = vadd.xlane.f32.xlu0 %v731
    %v733 = vpop.xlane.xlu0 %732
    %v734 = vmul.f32 %v730, %v168
    %v735 = vmul.f32 %v733, %v168
    %v736 = vadd.f32 %v734, 1e-12
    %v737 = vadd.f32 %v735, 1e-12
    %v738 = vrsqrt.pop %v736
    %v739 = vmul.f32 %v738, %v736
    %v740 = vmul.f32 %v739, %v738
    %v741 = vmul.f32 0.5, %v740
    %v742 = vsub.f32 1.5, %v741
    %v743 = vmul.f32 %v738, %v742
    %vm744 = vweird.f32 %v736
    %vm745 = vweird.f32 %v738
    %vm746 = vmor %vm744, %vm745
    %v747 = vsel %vm746, %v738, %v743
    %v748 = vrsqrt.pop %v737
    %v749 = vmul.f32 %v748, %v737
    %v750 = vmul.f32 %v749, %v748
    %v751 = vmul.f32 0.5, %v750
    %v752 = vsub.f32 1.5, %v751
    %v753 = vmul.f32 %v748, %v752
    %vm754 = vweird.f32 %v737
    %vm755 = vweird.f32 %v748
    %vm756 = vmor %vm754, %vm755
    %v757 = vsel %vm756, %v748, %v753
    %v758 = vmul.f32 %v724, %v747
    %v759 = vmul.f32 %v725, %v757
    %v760 = vperm.slane %v714, 0
    %v761 = vmul.f32 %v758, %v760
    %v762 = vmul.f32 %v759, %v760
    %v763 = vperm.slane %v715, 0
    %v764 = vadd.f32 %v761, %v763
    %v765 = vadd.f32 %v762, %v763
    %v766 = vld [vmem:[#allocation10 + $0x168] sm:$0xff]
    %v767 = vld [vmem:[#allocation10 + $0x170] sm:$0xff]
    %v768 = vld [vmem:[#allocation10 + $0x178] sm:$0xff]
    %v769 = vld [vmem:[#allocation10 + $0x180] sm:$0xff]
    %v770 = vld [vmem:[#allocation10 + $0x3ba] sm:$0x1]
    %v771 = vperm.slane %v770, 0
    %v773 = vsel %vm155, %v764, 0
    %v776 = vsel %vm155, %v765, 0
    %778 = vmatpush.msra.mxu0 0.0
    %779 = vmatpush.msra.mxu0 0.0
    %780 = vmatpush.msra.mxu0 0.0
    %781 = vmatpush.msra.mxu0 0.0
    %782 = vmatpush.msra.mxu0 0.0
    %783 = vmatpush.msra.mxu0 0.0
    %784 = vmatpush.msra.mxu0 0.0
    %785 = vmatpush.msra.mxu0 0.0
    %786 = vmatpush.msra.mxu0 0.0
    %787 = vmatpush.msra.mxu0 0.0
    %788 = vmatpush.msra.mxu0 0.0
    %789 = vmatpush.msra.mxu0 0.0
    %790 = vmatpush.msra.mxu0 %v769
    %791 = vmatpush.msra.mxu0 %v768
    %792 = vmatpush.msra.mxu0 %v767
    %793 = vmatpush.msra.mxu0 %v766
    %794 = vmatmul.f32.gmra.mxu0 %v773
    %v795 = vpop.f32.mrf.mxu0
    %v796 = vadd.f32 %v771, %v795
    %797 = vmatmul.f32.gmra.mxu0 %v776
    %v798 = vpop.f32.mrf.mxu0
    %v799 = vadd.f32 %v771, %v798
    %800 = vdwg.mxu0
    %v801 = vmul.f32 %v796, %v796
    %v802 = vmul.f32 %v799, %v799
    %v803 = vmul.f32 %v796, %v801
    %v804 = vmul.f32 %v799, %v802
    %v805 = vmul.f32 %v803, 0.044715
    %v806 = vmul.f32 %v804, 0.044715
    %v807 = vadd.f32 %v796, %v805
    %v808 = vadd.f32 %v799, %v806
    %v809 = vmul.f32 %v807, 0.7978846
    %v810 = vmul.f32 %v808, 0.7978846
    %v811 = vtanh.pop %v809
    %v812 = vtanh.pop %v810
    %v813 = vadd.f32 %v811, 1.0
    %v814 = vadd.f32 %v812, 1.0
    %v815 = vmul.f32 %v813, 0.5
    %v816 = vmul.f32 %v814, 0.5
    %v817 = vmul.f32 %v796, %v815
    %v818 = vmul.f32 %v799, %v816
    %v819 = vld [vmem:[#allocation10 + $0x188] sm:$0xff]
    %v820 = vld [vmem:[#allocation10 + $0x190] sm:$0xff]
    %v821 = vld [vmem:[#allocation10 + $0x198] sm:$0xff]
    %v822 = vld [vmem:[#allocation10 + $0x1a0] sm:$0xff]
    %v823 = vld [vmem:[#allocation10 + $0x1a8] sm:$0xff]
    %v824 = vld [vmem:[#allocation10 + $0x1b0] sm:$0xff]
    %v825 = vld [vmem:[#allocation10 + $0x1b8] sm:$0xff]
    %v826 = vld [vmem:[#allocation10 + $0x1c0] sm:$0xff]
    %v827 = vld [vmem:[#allocation10 + $0x1c8] sm:$0xff]
    %v828 = vld [vmem:[#allocation10 + $0x1d0] sm:$0xff]
    %v829 = vld [vmem:[#allocation10 + $0x1d8] sm:$0xff]
    %v830 = vld [vmem:[#allocation10 + $0x1e0] sm:$0xff]
    %v831 = vld [vmem:[#allocation10 + $0x1e8] sm:$0xff]
    %v832 = vld [vmem:[#allocation10 + $0x1f0] sm:$0xff]
    %v833 = vld [vmem:[#allocation10 + $0x1f8] sm:$0xff]
    %v834 = vld [vmem:[#allocation10 + $0x200] sm:$0xff]
    %v835 = vld [vmem:[#allocation10 + $0x3bb] sm:$0x1]
    %v836 = vperm.slane %v835, 0
    %837 = vmatpush.msra.mxu0 %v834
    %838 = vmatpush.msra.mxu0 %v833
    %839 = vmatpush.msra.mxu0 %v832
    %840 = vmatpush.msra.mxu0 %v831
    %841 = vmatpush.msra.mxu0 %v830
    %842 = vmatpush.msra.mxu0 %v829
    %843 = vmatpush.msra.mxu0 %v828
    %844 = vmatpush.msra.mxu0 %v827
    %845 = vmatpush.msra.mxu0 %v826
    %846 = vmatpush.msra.mxu0 %v825
    %847 = vmatpush.msra.mxu0 %v824
    %848 = vmatpush.msra.mxu0 %v823
    %849 = vmatpush.msra.mxu0 %v822
    %850 = vmatpush.msra.mxu0 %v821
    %851 = vmatpush.msra.mxu0 %v820
    %852 = vmatpush.msra.mxu0 %v819
    %853 = vmatmul.f32.gmra.mxu0 %v817
    %v854 = vpop.f32.mrf.mxu0
    %v855 = vadd.f32 %v836, %v854
    %856 = vmatmul.f32.gmra.mxu0 %v818
    %v857 = vpop.f32.mrf.mxu0
    %v858 = vadd.f32 %v836, %v857
    %859 = vdwg.mxu0
    %v860 = vadd.f32 %v855, %v764
    %v861 = vadd.f32 %v858, %v765
    %v862 = vld [vmem:[#allocation10 + $0x3bc] sm:$0x1]
    %v863 = vld [vmem:[#allocation10 + $0x3bd] sm:$0x1]
    %v864 = vsel %vm155, %v860, 0.0
    %865 = vadd.xlane.f32.xlu0 %v864
    %v866 = vpop.xlane.xlu0 %865
    %v867 = vsel %vm155, %v861, 0.0
    %868 = vadd.xlane.f32.xlu0 %v867
    %v869 = vpop.xlane.xlu0 %868
    %v870 = vmul.f32 %v866, %v168
    %v871 = vmul.f32 %v869, %v168
    %v872 = vsub.f32 %v860, %v870
    %v873 = vsub.f32 %v861, %v871
    %v874 = vmul.f32 %v872, %v872
    %v875 = vmul.f32 %v873, %v873
    %v876 = vsel %vm155, %v874, 0.0
    %877 = vadd.xlane.f32.xlu0 %v876
    %v878 = vpop.xlane.xlu0 %877
    %v879 = vsel %vm155, %v875, 0.0
    %880 = vadd.xlane.f32.xlu0 %v879
    %v881 = vpop.xlane.xlu0 %880
    %v882 = vmul.f32 %v878, %v168
    %v883 = vmul.f32 %v881, %v168
    %v884 = vadd.f32 %v882, 1e-12
    %v885 = vadd.f32 %v883, 1e-12
    %v886 = vrsqrt.pop %v884
    %v887 = vmul.f32 %v886, %v884
    %v888 = vmul.f32 %v887, %v886
    %v889 = vmul.f32 0.5, %v888
    %v890 = vsub.f32 1.5, %v889
    %v891 = vmul.f32 %v886, %v890
    %vm892 = vweird.f32 %v884
    %vm893 = vweird.f32 %v886
    %vm894 = vmor %vm892, %vm893
    %v895 = vsel %vm894, %v886, %v891
    %v896 = vrsqrt.pop %v885
    %v897 = vmul.f32 %v896, %v885
    %v898 = vmul.f32 %v897, %v896
    %v899 = vmul.f32 0.5, %v898
    %v900 = vsub.f32 1.5, %v899
    %v901 = vmul.f32 %v896, %v900
    %vm902 = vweird.f32 %v885
    %vm903 = vweird.f32 %v896
    %vm904 = vmor %vm902, %vm903
    %v905 = vsel %vm904, %v896, %v901
    %v906 = vmul.f32 %v872, %v895
    %v907 = vmul.f32 %v873, %v905
    %v908 = vperm.slane %v862, 0
    %v909 = vmul.f32 %v906, %v908
    %v910 = vmul.f32 %v907, %v908
    %v911 = vperm.slane %v863, 0
    %v912 = vadd.f32 %v909, %v911
    %v913 = vadd.f32 %v910, %v911
    %v914 = vld [vmem:[#allocation10 + $0x208] sm:$0xff]
    %v915 = vld [vmem:[#allocation10 + $0x210] sm:$0xff]
    %v916 = vld [vmem:[#allocation10 + $0x218] sm:$0xff]
    %v917 = vld [vmem:[#allocation10 + $0x220] sm:$0xff]
    %v918 = vld [vmem:[#allocation10 + $0x3be] sm:$0x1]
    %v919 = vperm.slane %v918, 0
    %v921 = vsel %vm155, %v912, 0
    %v924 = vsel %vm155, %v913, 0
    %926 = vmatpush.msra.mxu0 0.0
    %927 = vmatpush.msra.mxu0 0.0
    %928 = vmatpush.msra.mxu0 0.0
    %929 = vmatpush.msra.mxu0 0.0
    %930 = vmatpush.msra.mxu0 0.0
    %931 = vmatpush.msra.mxu0 0.0
    %932 = vmatpush.msra.mxu0 0.0
    %933 = vmatpush.msra.mxu0 0.0
    %934 = vmatpush.msra.mxu0 0.0
    %935 = vmatpush.msra.mxu0 0.0
    %936 = vmatpush.msra.mxu0 0.0
    %937 = vmatpush.msra.mxu0 0.0
    %938 = vmatpush.msra.mxu0 %v917
    %939 = vmatpush.msra.mxu0 %v916
    %940 = vmatpush.msra.mxu0 %v915
    %941 = vmatpush.msra.mxu0 %v914
    %942 = vmatmul.f32.gmra.mxu0 %v921
    %v943 = vpop.f32.mrf.mxu0
    %v944 = vadd.f32 %v919, %v943
    %945 = vmatmul.f32.gmra.mxu0 %v924
    %v946 = vpop.f32.mrf.mxu0
    %v947 = vadd.f32 %v919, %v946
    %948 = vdwg.mxu0
    %v949 = vld [vmem:[#allocation10 + $0x228] sm:$0xff]
    %v950 = vld [vmem:[#allocation10 + $0x230] sm:$0xff]
    %v951 = vld [vmem:[#allocation10 + $0x238] sm:$0xff]
    %v952 = vld [vmem:[#allocation10 + $0x240] sm:$0xff]
    %v953 = vld [vmem:[#allocation10 + $0x3bf] sm:$0x1]
    %v954 = vperm.slane %v953, 0
    %955 = vmatpush.msra.mxu0 0.0
    %956 = vmatpush.msra.mxu0 0.0
    %957 = vmatpush.msra.mxu0 0.0
    %958 = vmatpush.msra.mxu0 0.0
    %959 = vmatpush.msra.mxu0 0.0
    %960 = vmatpush.msra.mxu0 0.0
    %961 = vmatpush.msra.mxu0 0.0
    %962 = vmatpush.msra.mxu0 0.0
    %963 = vmatpush.msra.mxu0 0.0
    %964 = vmatpush.msra.mxu0 0.0
    %965 = vmatpush.msra.mxu0 0.0
    %966 = vmatpush.msra.mxu0 0.0
    %967 = vmatpush.msra.mxu0 %v952
    %968 = vmatpush.msra.mxu0 %v951
    %969 = vmatpush.msra.mxu0 %v950
    %970 = vmatpush.msra.mxu0 %v949
    %971 = vmatmul.f32.gmra.mxu0 %v921
    %v972 = vpop.f32.mrf.mxu0
    %v973 = vadd.f32 %v954, %v972
    %974 = vmatmul.f32.gmra.mxu0 %v924
    %v975 = vpop.f32.mrf.mxu0
    %v976 = vadd.f32 %v954, %v975
    %977 = vdwg.mxu0
    %v978 = vld [vmem:[#allocation10 + $0x248] sm:$0xff]
    %v979 = vld [vmem:[#allocation10 + $0x250] sm:$0xff]
    %v980 = vld [vmem:[#allocation10 + $0x258] sm:$0xff]
    %v981 = vld [vmem:[#allocation10 + $0x260] sm:$0xff]
    %v982 = vld [vmem:[#allocation10 + $0x3c0] sm:$0x1]
    %v983 = vperm.slane %v982, 0
    %984 = vmatpush.msra.mxu0 0.0
    %985 = vmatpush.msra.mxu0 0.0
    %986 = vmatpush.msra.mxu0 0.0
    %987 = vmatpush.msra.mxu0 0.0
    %988 = vmatpush.msra.mxu0 0.0
    %989 = vmatpush.msra.mxu0 0.0
    %990 = vmatpush.msra.mxu0 0.0
    %991 = vmatpush.msra.mxu0 0.0
    %992 = vmatpush.msra.mxu0 0.0
    %993 = vmatpush.msra.mxu0 0.0
    %994 = vmatpush.msra.mxu0 0.0
    %995 = vmatpush.msra.mxu0 0.0
    %996 = vmatpush.msra.mxu0 %v981
    %997 = vmatpush.msra.mxu0 %v980
    %998 = vmatpush.msra.mxu0 %v979
    %999 = vmatpush.msra.mxu0 %v978
    %1000 = vmatmul.f32.gmra.mxu0 %v921
    %v1001 = vpop.f32.mrf.mxu0
    %v1002 = vadd.f32 %v983, %v1001
    %1003 = vmatmul.f32.gmra.mxu0 %v924
    %v1004 = vpop.f32.mrf.mxu0
    %v1005 = vadd.f32 %v983, %v1004
    %1006 = vdwg.mxu0
    %v1008 = vsel %vm213, %v944, 0
    %v1011 = vsel %vm213, %v947, 0
    %v1014 = vsel %vm213, %v973, 0
    %v1017 = vsel %vm213, %v976, 0
    %1019 = vmatpush.xpose.msra.mxu0 0.0
    %1020 = vmatpush.xpose.msra.mxu0 0.0
    %1021 = vmatpush.xpose.msra.mxu0 0.0
    %1022 = vmatpush.xpose.msra.mxu0 0.0
    %1023 = vmatpush.xpose.msra.mxu0 0.0
    %1024 = vmatpush.xpose.msra.mxu0 0.0
    %1025 = vmatpush.xpose.msra.mxu0 0.0
    %1026 = vmatpush.xpose.msra.mxu0 0.0
    %1027 = vmatpush.xpose.msra.mxu0 0.0
    %1028 = vmatpush.xpose.msra.mxu0 0.0
    %1029 = vmatpush.xpose.msra.mxu0 0.0
    %1030 = vmatpush.xpose.msra.mxu0 0.0
    %1031 = vmatpush.xpose.msra.mxu0 0.0
    %1032 = vmatpush.xpose.msra.mxu0 0.0
    %1033 = vmatpush.xpose.msra.mxu0 %v1017
    %1034 = vmatpush.xpose.msra.mxu0 %v1014
    %1035 = vmatmul.f32.gmra.mxu0 %v1008
    %v1036 = vpop.f32.mrf.mxu0
    %v1037 = vadd.f32 0.0, %v1036
    %1038 = vmatmul.f32.gmra.mxu0 %v1011
    %v1039 = vpop.f32.mrf.mxu0
    %v1040 = vadd.f32 0.0, %v1039
    %1041 = vdwg.mxu0
    %v1042 = vmul.f32 %v1037, 0.25
    %v1043 = vmul.f32 %v1040, 0.25
    %v1044 = vadd.f32 %v1042, %v232
    %v1045 = vadd.f32 %v1043, %v233
    %v1046 = vsel %vm213, %v1044, -inf
    %1047 = vmax.xlane.f32.xlu0 %v1046
    %v1048 = vpop.xlane.xlu0 %1047
    %v1049 = vsel %vm213, %v1045, -inf
    %1050 = vmax.xlane.f32.xlu0 %v1049
    %v1051 = vpop.xlane.xlu0 %1050
    %v1052 = vsub.f32 %v1044, %v1048
    %v1053 = vsub.f32 %v1045, %v1051
    %v1054 = vmul.f32 %v1052, 1.442695
    %v1055 = vpow.pop %v1054
    %v1056 = vmul.f32 %v1053, 1.442695
    %v1057 = vpow.pop %v1056
    %v1058 = vsel %vm213, %v1055, 0.0
    %1059 = vadd.xlane.f32.xlu0 %v1058
    %v1060 = vpop.xlane.xlu0 %1059
    %v1061 = vsel %vm213, %v1057, 0.0
    %1062 = vadd.xlane.f32.xlu0 %v1061
    %v1063 = vpop.xlane.xlu0 %1062
    %v1064 = vrcp.pop %v1060
    %v1065 = vmul.f32 %v1060, %v1064
    %v1066 = vsub.f32 1.0, %v1065
    %v1067 = vmul.f32 %v1064, %v1066
    %v1068 = vadd.f32 %v1064, %v1067
    %vm1069 = vweird.f32 %v1060
    %vm1070 = vweird.f32 %v1064
    %vm1071 = vmor %vm1069, %vm1070
    %v1072 = vsel %vm1071, %v1064, %v1068
    %v1073 = vand.u32 2147483647, %v1060
    %vm1074 = vcmp.eq.f32.partialorder %v1073, 8.507059e+37
    %v1075 = vand.u32 %v1060, 2147483648
    %v1076 = vor.u32 1.1754944e-38, %v1075
    %v1077 = vsel %vm1074, %v1076, %v1072
    %v1078 = vmul.f32 %v1055, %v1077
    %v1079 = vrcp.pop %v1063
    %v1080 = vmul.f32 %v1063, %v1079
    %v1081 = vsub.f32 1.0, %v1080
    %v1082 = vmul.f32 %v1079, %v1081
    %v1083 = vadd.f32 %v1079, %v1082
    %vm1084 = vweird.f32 %v1063
    %vm1085 = vweird.f32 %v1079
    %vm1086 = vmor %vm1084, %vm1085
    %v1087 = vsel %vm1086, %v1079, %v1083
    %v1088 = vand.u32 2147483647, %v1063
    %vm1089 = vcmp.eq.f32.partialorder %v1088, 8.507059e+37
    %v1090 = vand.u32 %v1063, 2147483648
    %v1091 = vor.u32 1.1754944e-38, %v1090
    %v1092 = vsel %vm1089, %v1091, %v1087
    %v1093 = vmul.f32 %v1057, %v1092
    %v1095 = vsel %vm213, %v1078, 0
    %v1098 = vsel %vm213, %v1093, 0
    %1100 = vmatpush.msra.mxu0 0.0
    %1101 = vmatpush.msra.mxu0 0.0
    %1102 = vmatpush.msra.mxu0 0.0
    %1103 = vmatpush.msra.mxu0 0.0
    %1104 = vmatpush.msra.mxu0 0.0
    %1105 = vmatpush.msra.mxu0 0.0
    %1106 = vmatpush.msra.mxu0 0.0
    %1107 = vmatpush.msra.mxu0 0.0
    %1108 = vmatpush.msra.mxu0 0.0
    %1109 = vmatpush.msra.mxu0 0.0
    %1110 = vmatpush.msra.mxu0 0.0
    %1111 = vmatpush.msra.mxu0 0.0
    %1112 = vmatpush.msra.mxu0 0.0
    %1113 = vmatpush.msra.mxu0 0.0
    %1114 = vmatpush.msra.mxu0 %v1005
    %1115 = vmatpush.msra.mxu0 %v1002
    %1116 = vmatmul.f32.gmra.mxu0 %v1095
    %v1117 = vpop.f32.mrf.mxu0
    %v1118 = vadd.f32 0.0, %v1117
    %1119 = vmatmul.f32.gmra.mxu0 %v1098
    %v1120 = vpop.f32.mrf.mxu0
    %v1121 = vadd.f32 0.0, %v1120
    %1122 = vdwg.mxu0
    %v1123 = vld [vmem:[#allocation10 + $0x268] sm:$0xff]
    %v1124 = vld [vmem:[#allocation10 + $0x270] sm:$0xff]
    %v1125 = vld [vmem:[#allocation10 + $0x278] sm:$0xff]
    %v1126 = vld [vmem:[#allocation10 + $0x280] sm:$0xff]
    %v1127 = vld [vmem:[#allocation10 + $0x288] sm:$0xff]
    %v1128 = vld [vmem:[#allocation10 + $0x290] sm:$0xff]
    %v1129 = vld [vmem:[#allocation10 + $0x3c1] sm:$0x1]
    %v1130 = vperm.slane %v1129, 0
    %1131 = vmatpush.msra.mxu0 0.0
    %1132 = vmatpush.msra.mxu0 0.0
    %1133 = vmatpush.msra.mxu0 0.0
    %1134 = vmatpush.msra.mxu0 0.0
    %1135 = vmatpush.msra.mxu0 0.0
    %1136 = vmatpush.msra.mxu0 0.0
    %1137 = vmatpush.msra.mxu0 0.0
    %1138 = vmatpush.msra.mxu0 0.0
    %1139 = vmatpush.msra.mxu0 0.0
    %1140 = vmatpush.msra.mxu0 0.0
    %1141 = vmatpush.msra.mxu0 0.0
    %1142 = vmatpush.msra.mxu0 0.0
    %1143 = vmatpush.msra.mxu0 %v1128
    %1144 = vmatpush.msra.mxu0 %v1127
    %1145 = vmatpush.msra.mxu0 %v1126
    %1146 = vmatpush.msra.mxu0 %v1125
    %1147 = vmatmul.f32.gmra.mxu0 %v921
    %v1148 = vpop.f32.mrf.mxu0
    %v1149 = vadd.f32 %v1130, %v1148
    %1150 = vmatmul.f32.gmra.mxu0 %v924
    %v1151 = vpop.f32.mrf.mxu0
    %v1152 = vadd.f32 %v1130, %v1151
    %1153 = vdwg.mxu0
    %v1154 = vld [vmem:[#allocation10 + $0x298] sm:$0xff]
    %v1155 = vld [vmem:[#allocation10 + $0x2a0] sm:$0xff]
    %v1156 = vld [vmem:[#allocation10 + $0x2a8] sm:$0xff]
    %v1157 = vld [vmem:[#allocation10 + $0x2b0] sm:$0xff]
    %v1158 = vld [vmem:[#allocation10 + $0x3c2] sm:$0x1]
    %v1159 = vperm.slane %v1158, 0
    %1160 = vmatpush.msra.mxu0 0.0
    %1161 = vmatpush.msra.mxu0 0.0
    %1162 = vmatpush.msra.mxu0 0.0
    %1163 = vmatpush.msra.mxu0 0.0
    %1164 = vmatpush.msra.mxu0 0.0
    %1165 = vmatpush.msra.mxu0 0.0
    %1166 = vmatpush.msra.mxu0 0.0
    %1167 = vmatpush.msra.mxu0 0.0
    %1168 = vmatpush.msra.mxu0 0.0
    %1169 = vmatpush.msra.mxu0 0.0
    %1170 = vmatpush.msra.mxu0 0.0
    %1171 = vmatpush.msra.mxu0 0.0
    %1172 = vmatpush.msra.mxu0 %v1157
    %1173 = vmatpush.msra.mxu0 %v1156
    %1174 = vmatpush.msra.mxu0 %v1155
    %1175 = vmatpush.msra.mxu0 %v1154
    %1176 = vmatmul.f32.gmra.mxu0 %v921
    %v1177 = vpop.f32.mrf.mxu0
    %v1178 = vadd.f32 %v1159, %v1177
    %1179 = vmatmul.f32.gmra.mxu0 %v924
    %v1180 = vpop.f32.mrf.mxu0
    %v1181 = vadd.f32 %v1159, %v1180
    %1182 = vdwg.mxu0
    %v1183 = vld [vmem:[#allocation10 + $0x2b8] sm:$0xff]
    %v1184 = vld [vmem:[#allocation10 + $0x2c0] sm:$0xff]
    %v1185 = vld [vmem:[#allocation10 + $0x2c8] sm:$0xff]
    %v1186 = vld [vmem:[#allocation10 + $0x2d0] sm:$0xff]
    %v1187 = vld [vmem:[#allocation10 + $0x3c3] sm:$0x1]
    %v1188 = vperm.slane %v1187, 0
    %1189 = vmatpush.msra.mxu0 0.0
    %1190 = vmatpush.msra.mxu0 0.0
    %1191 = vmatpush.msra.mxu0 0.0
    %1192 = vmatpush.msra.mxu0 0.0
    %1193 = vmatpush.msra.mxu0 0.0
    %1194 = vmatpush.msra.mxu0 0.0
    %1195 = vmatpush.msra.mxu0 0.0
    %1196 = vmatpush.msra.mxu0 0.0
    %1197 = vmatpush.msra.mxu0 0.0
    %1198 = vmatpush.msra.mxu0 0.0
    %1199 = vmatpush.msra.mxu0 0.0
    %1200 = vmatpush.msra.mxu0 0.0
    %1201 = vmatpush.msra.mxu0 %v1186
    %1202 = vmatpush.msra.mxu0 %v1185
    %1203 = vmatpush.msra.mxu0 %v1184
    %1204 = vmatpush.msra.mxu0 %v1183
    %1205 = vmatmul.f32.gmra.mxu0 %v921
    %v1206 = vpop.f32.mrf.mxu0
    %v1207 = vadd.f32 %v1188, %v1206
    %1208 = vmatmul.f32.gmra.mxu0 %v924
    %v1209 = vpop.f32.mrf.mxu0
    %v1210 = vadd.f32 %v1188, %v1209
    %1211 = vdwg.mxu0
    %v1213 = vsel %vm213, %v1149, 0
    %v1216 = vsel %vm213, %v1152, 0
    %v1219 = vsel %vm213, %v1178, 0
    %v1222 = vsel %vm213, %v1181, 0
    %1224 = vmatpush.xpose.msra.mxu0 0.0
    %1225 = vmatpush.xpose.msra.mxu0 0.0
    %1226 = vmatpush.xpose.msra.mxu0 0.0
    %1227 = vmatpush.xpose.msra.mxu0 0.0
    %1228 = vmatpush.xpose.msra.mxu0 0.0
    %1229 = vmatpush.xpose.msra.mxu0 0.0
    %1230 = vmatpush.xpose.msra.mxu0 0.0
    %1231 = vmatpush.xpose.msra.mxu0 0.0
    %1232 = vmatpush.xpose.msra.mxu0 0.0
    %1233 = vmatpush.xpose.msra.mxu0 0.0
    %1234 = vmatpush.xpose.msra.mxu0 0.0
    %1235 = vmatpush.xpose.msra.mxu0 0.0
    %1236 = vmatpush.xpose.msra.mxu0 0.0
    %1237 = vmatpush.xpose.msra.mxu0 0.0
    %1238 = vmatpush.xpose.msra.mxu0 %v1222
    %1239 = vmatpush.xpose.msra.mxu0 %v1219
    %1240 = vmatmul.f32.gmra.mxu0 %v1213
    %v1241 = vpop.f32.mrf.mxu0
    %v1242 = vadd.f32 0.0, %v1241
    %1243 = vmatmul.f32.gmra.mxu0 %v1216
    %v1244 = vpop.f32.mrf.mxu0
    %v1245 = vadd.f32 0.0, %v1244
    %1246 = vdwg.mxu0
    %v1247 = vmul.f32 %v1242, 0.25
    %v1248 = vmul.f32 %v1245, 0.25
    %v1249 = vadd.f32 %v1247, %v232
    %v1250 = vadd.f32 %v1248, %v233
    %v1251 = vsel %vm213, %v1249, -inf
    %1252 = vmax.xlane.f32.xlu0 %v1251
    %v1253 = vpop.xlane.xlu0 %1252
    %v1254 = vsel %vm213, %v1250, -inf
    %1255 = vmax.xlane.f32.xlu0 %v1254
    %v1256 = vpop.xlane.xlu0 %1255
    %v1257 = vsub.f32 %v1249, %v1253
    %v1258 = vsub.f32 %v1250, %v1256
    %v1259 = vmul.f32 %v1257, 1.442695
    %v1260 = vpow.pop %v1259
    %v1261 = vmul.f32 %v1258, 1.442695
    %v1262 = vpow.pop %v1261
    %v1263 = vsel %vm213, %v1260, 0.0
    %1264 = vadd.xlane.f32.xlu0 %v1263
    %v1265 = vpop.xlane.xlu0 %1264
    %v1266 = vsel %vm213, %v1262, 0.0
    %1267 = vadd.xlane.f32.xlu0 %v1266
    %v1268 = vpop.xlane.xlu0 %1267
    %v1269 = vrcp.pop %v1265
    %v1270 = vmul.f32 %v1265, %v1269
    %v1271 = vsub.f32 1.0, %v1270
    %v1272 = vmul.f32 %v1269, %v1271
    %v1273 = vadd.f32 %v1269, %v1272
    %vm1274 = vweird.f32 %v1265
    %vm1275 = vweird.f32 %v1269
    %vm1276 = vmor %vm1274, %vm1275
    %v1277 = vsel %vm1276, %v1269, %v1273
    %v1278 = vand.u32 2147483647, %v1265
    %vm1279 = vcmp.eq.f32.partialorder %v1278, 8.507059e+37
    %v1280 = vand.u32 %v1265, 2147483648
    %v1281 = vor.u32 1.1754944e-38, %v1280
    %v1282 = vsel %vm1279, %v1281, %v1277
    %v1283 = vmul.f32 %v1260, %v1282
    %v1284 = vrcp.pop %v1268
    %v1285 = vmul.f32 %v1268, %v1284
    %v1286 = vsub.f32 1.0, %v1285
    %v1287 = vmul.f32 %v1284, %v1286
    %v1288 = vadd.f32 %v1284, %v1287
    %vm1289 = vweird.f32 %v1268
    %vm1290 = vweird.f32 %v1284
    %vm1291 = vmor %vm1289, %vm1290
    %v1292 = vsel %vm1291, %v1284, %v1288
    %v1293 = vand.u32 2147483647, %v1268
    %vm1294 = vcmp.eq.f32.partialorder %v1293, 8.507059e+37
    %v1295 = vand.u32 %v1268, 2147483648
    %v1296 = vor.u32 1.1754944e-38, %v1295
    %v1297 = vsel %vm1294, %v1296, %v1292
    %v1298 = vmul.f32 %v1262, %v1297
    %v1300 = vsel %vm213, %v1283, 0
    %v1303 = vsel %vm213, %v1298, 0
    %1305 = vmatpush.msra.mxu0 0.0
    %1306 = vmatpush.msra.mxu0 0.0
    %1307 = vmatpush.msra.mxu0 0.0
    %1308 = vmatpush.msra.mxu0 0.0
    %1309 = vmatpush.msra.mxu0 0.0
    %1310 = vmatpush.msra.mxu0 0.0
    %1311 = vmatpush.msra.mxu0 0.0
    %1312 = vmatpush.msra.mxu0 0.0
    %1313 = vmatpush.msra.mxu0 0.0
    %1314 = vmatpush.msra.mxu0 0.0
    %1315 = vmatpush.msra.mxu0 0.0
    %1316 = vmatpush.msra.mxu0 0.0
    %1317 = vmatpush.msra.mxu0 0.0
    %1318 = vmatpush.msra.mxu0 0.0
    %1319 = vmatpush.msra.mxu0 %v1210
    %1320 = vmatpush.msra.mxu0 %v1207
    %1321 = vmatmul.f32.gmra.mxu0 %v1300
    %v1322 = vpop.f32.mrf.mxu0
    %v1323 = vadd.f32 0.0, %v1322
    %1324 = vmatmul.f32.gmra.mxu0 %v1303
    %v1325 = vpop.f32.mrf.mxu0
    %v1326 = vadd.f32 0.0, %v1325
    %1327 = vdwg.mxu0
    %v1328 = vld [vmem:[#allocation10 + $0x2d8] sm:$0xff]
    %v1329 = vld [vmem:[#allocation10 + $0x2e0] sm:$0xff]
    %v1331 = vsel %vm213, %v1323, 0
    %v1334 = vsel %vm213, %v1326, 0
    %1336 = vmatpush.msra.mxu0 0.0
    %1337 = vmatpush.msra.mxu0 0.0
    %1338 = vmatpush.msra.mxu0 0.0
    %1339 = vmatpush.msra.mxu0 0.0
    %1340 = vmatpush.msra.mxu0 0.0
    %1341 = vmatpush.msra.mxu0 0.0
    %1342 = vmatpush.msra.mxu0 0.0
    %1343 = vmatpush.msra.mxu0 0.0
    %1344 = vmatpush.msra.mxu0 0.0
    %1345 = vmatpush.msra.mxu0 0.0
    %1346 = vmatpush.msra.mxu0 0.0
    %1347 = vmatpush.msra.mxu0 0.0
    %1348 = vmatpush.msra.mxu0 0.0
    %1349 = vmatpush.msra.mxu0 0.0
    %1350 = vmatpush.msra.mxu0 %v1329
    %1351 = vmatpush.msra.mxu0 %v1328
    %1352 = vmatmul.f32.gmra.mxu0 %v1331
    %v1353 = vpop.f32.mrf.mxu0
    %v1354 = vadd.f32 0.0, %v1353
    %1355 = vmatmul.f32.gmra.mxu0 %v1334
    %v1356 = vpop.f32.mrf.mxu0
    %v1357 = vadd.f32 0.0, %v1356
    %1358 = vdwg.mxu0
    %v1360 = vsel %vm213, %v1118, 0
    %v1363 = vsel %vm213, %v1121, 0
    %1365 = vmatpush.msra.mxu0 0.0
    %1366 = vmatpush.msra.mxu0 0.0
    %1367 = vmatpush.msra.mxu0 0.0
    %1368 = vmatpush.msra.mxu0 0.0
    %1369 = vmatpush.msra.mxu0 0.0
    %1370 = vmatpush.msra.mxu0 0.0
    %1371 = vmatpush.msra.mxu0 0.0
    %1372 = vmatpush.msra.mxu0 0.0
    %1373 = vmatpush.msra.mxu0 0.0
    %1374 = vmatpush.msra.mxu0 0.0
    %1375 = vmatpush.msra.mxu0 0.0
    %1376 = vmatpush.msra.mxu0 0.0
    %1377 = vmatpush.msra.mxu0 0.0
    %1378 = vmatpush.msra.mxu0 0.0
    %1379 = vmatpush.msra.mxu0 %v1124
    %1380 = vmatpush.msra.mxu0 %v1123
    %1381 = vmatmul.f32.gmra.mxu0 %v1360
    %v1382 = vpop.f32.mrf.mxu0
    %v1383 = vadd.f32 %v1354, %v1382
    %1384 = vmatmul.f32.gmra.mxu0 %v1363
    %v1385 = vpop.f32.mrf.mxu0
    %v1386 = vadd.f32 %v1357, %v1385
    %1387 = vdwg.mxu0
    %v1388 = vld [vmem:[#allocation10 + $0x3c4] sm:$0x1]
    %v1389 = vperm.slane %v1388, 0
    %v1390 = vadd.f32 %v1383, %v1389
    %v1391 = vadd.f32 %v1386, %v1389
    %v1392 = vadd.f32 %v1390, %v912
    %v1393 = vadd.f32 %v1391, %v913
    %v1394 = vld [vmem:[#allocation10 + $0x3c5] sm:$0x1]
    %v1395 = vld [vmem:[#allocation10 + $0x3c6] sm:$0x1]
    %v1396 = vsel %vm155, %v1392, 0.0
    %1397 = vadd.xlane.f32.xlu0 %v1396
    %v1398 = vpop.xlane.xlu0 %1397
    %v1399 = vsel %vm155, %v1393, 0.0
    %1400 = vadd.xlane.f32.xlu0 %v1399
    %v1401 = vpop.xlane.xlu0 %1400
    %v1402 = vmul.f32 %v1398, %v168
    %v1403 = vmul.f32 %v1401, %v168
    %v1404 = vsub.f32 %v1392, %v1402
    %v1405 = vsub.f32 %v1393, %v1403
    %v1406 = vmul.f32 %v1404, %v1404
    %v1407 = vmul.f32 %v1405, %v1405
    %v1408 = vsel %vm155, %v1406, 0.0
    %1409 = vadd.xlane.f32.xlu0 %v1408
    %v1410 = vpop.xlane.xlu0 %1409
    %v1411 = vsel %vm155, %v1407, 0.0
    %1412 = vadd.xlane.f32.xlu0 %v1411
    %v1413 = vpop.xlane.xlu0 %1412
    %v1414 = vmul.f32 %v1410, %v168
    %v1415 = vmul.f32 %v1413, %v168
    %v1416 = vadd.f32 %v1414, 1e-12
    %v1417 = vadd.f32 %v1415, 1e-12
    %v1418 = vrsqrt.pop %v1416
    %v1419 = vmul.f32 %v1418, %v1416
    %v1420 = vmul.f32 %v1419, %v1418
    %v1421 = vmul.f32 0.5, %v1420
    %v1422 = vsub.f32 1.5, %v1421
    %v1423 = vmul.f32 %v1418, %v1422
    %vm1424 = vweird.f32 %v1416
    %vm1425 = vweird.f32 %v1418
    %vm1426 = vmor %vm1424, %vm1425
    %v1427 = vsel %vm1426, %v1418, %v1423
    %v1428 = vrsqrt.pop %v1417
    %v1429 = vmul.f32 %v1428, %v1417
    %v1430 = vmul.f32 %v1429, %v1428
    %v1431 = vmul.f32 0.5, %v1430
    %v1432 = vsub.f32 1.5, %v1431
    %v1433 = vmul.f32 %v1428, %v1432
    %vm1434 = vweird.f32 %v1417
    %vm1435 = vweird.f32 %v1428
    %vm1436 = vmor %vm1434, %vm1435
    %v1437 = vsel %vm1436, %v1428, %v1433
    %v1438 = vmul.f32 %v1404, %v1427
    %v1439 = vmul.f32 %v1405, %v1437
    %v1440 = vperm.slane %v1394, 0
    %v1441 = vmul.f32 %v1438, %v1440
    %v1442 = vmul.f32 %v1439, %v1440
    %v1443 = vperm.slane %v1395, 0
    %v1444 = vadd.f32 %v1441, %v1443
    %v1445 = vadd.f32 %v1442, %v1443
    %v1446 = vld [vmem:[#allocation10 + $0x2e8] sm:$0xff]
    %v1447 = vld [vmem:[#allocation10 + $0x2f0] sm:$0xff]
    %v1448 = vld [vmem:[#allocation10 + $0x2f8] sm:$0xff]
    %v1449 = vld [vmem:[#allocation10 + $0x300] sm:$0xff]
    %v1450 = vld [vmem:[#allocation10 + $0x3c7] sm:$0x1]
    %v1451 = vperm.slane %v1450, 0
    %v1453 = vsel %vm155, %v1444, 0
    %v1456 = vsel %vm155, %v1445, 0
    %1458 = vmatpush.msra.mxu0 0.0
    %1459 = vmatpush.msra.mxu0 0.0
    %1460 = vmatpush.msra.mxu0 0.0
    %1461 = vmatpush.msra.mxu0 0.0
    %1462 = vmatpush.msra.mxu0 0.0
    %1463 = vmatpush.msra.mxu0 0.0
    %1464 = vmatpush.msra.mxu0 0.0
    %1465 = vmatpush.msra.mxu0 0.0
    %1466 = vmatpush.msra.mxu0 0.0
    %1467 = vmatpush.msra.mxu0 0.0
    %1468 = vmatpush.msra.mxu0 0.0
    %1469 = vmatpush.msra.mxu0 0.0
    %1470 = vmatpush.msra.mxu0 %v1449
    %1471 = vmatpush.msra.mxu0 %v1448
    %1472 = vmatpush.msra.mxu0 %v1447
    %1473 = vmatpush.msra.mxu0 %v1446
    %1474 = vmatmul.f32.gmra.mxu0 %v1453
    %v1475 = vpop.f32.mrf.mxu0
    %v1476 = vadd.f32 %v1451, %v1475
    %1477 = vmatmul.f32.gmra.mxu0 %v1456
    %v1478 = vpop.f32.mrf.mxu0
    %v1479 = vadd.f32 %v1451, %v1478
    %1480 = vdwg.mxu0
    %v1481 = vmul.f32 %v1476, %v1476
    %v1482 = vmul.f32 %v1479, %v1479
    %v1483 = vmul.f32 %v1476, %v1481
    %v1484 = vmul.f32 %v1479, %v1482
    %v1485 = vmul.f32 %v1483, 0.044715
    %v1486 = vmul.f32 %v1484, 0.044715
    %v1487 = vadd.f32 %v1476, %v1485
    %v1488 = vadd.f32 %v1479, %v1486
    %v1489 = vmul.f32 %v1487, 0.7978846
    %v1490 = vmul.f32 %v1488, 0.7978846
    %v1491 = vtanh.pop %v1489
    %v1492 = vtanh.pop %v1490
    %v1493 = vadd.f32 %v1491, 1.0
    %v1494 = vadd.f32 %v1492, 1.0
    %v1495 = vmul.f32 %v1493, 0.5
    %v1496 = vmul.f32 %v1494, 0.5
    %v1497 = vmul.f32 %v1476, %v1495
    %v1498 = vmul.f32 %v1479, %v1496
    %v1499 = vld [vmem:[#allocation10 + $0x308] sm:$0xff]
    %v1500 = vld [vmem:[#allocation10 + $0x310] sm:$0xff]
    %v1501 = vld [vmem:[#allocation10 + $0x318] sm:$0xff]
    %v1502 = vld [vmem:[#allocation10 + $0x320] sm:$0xff]
    %v1503 = vld [vmem:[#allocation10 + $0x328] sm:$0xff]
    %v1504 = vld [vmem:[#allocation10 + $0x330] sm:$0xff]
    %v1505 = vld [vmem:[#allocation10 + $0x338] sm:$0xff]
    %v1506 = vld [vmem:[#allocation10 + $0x340] sm:$0xff]
    %v1507 = vld [vmem:[#allocation10 + $0x348] sm:$0xff]
    %v1508 = vld [vmem:[#allocation10 + $0x350] sm:$0xff]
    %v1509 = vld [vmem:[#allocation10 + $0x358] sm:$0xff]
    %v1510 = vld [vmem:[#allocation10 + $0x360] sm:$0xff]
    %v1511 = vld [vmem:[#allocation10 + $0x368] sm:$0xff]
    %v1512 = vld [vmem:[#allocation10 + $0x370] sm:$0xff]
    %v1513 = vld [vmem:[#allocation10 + $0x378] sm:$0xff]
    %v1514 = vld [vmem:[#allocation10 + $0x380] sm:$0xff]
    %v1515 = vld [vmem:[#allocation10 + $0x3c8] sm:$0x1]
    %v1516 = vperm.slane %v1515, 0
    %1517 = vmatpush.msra.mxu0 %v1514
    %1518 = vmatpush.msra.mxu0 %v1513
    %1519 = vmatpush.msra.mxu0 %v1512
    %1520 = vmatpush.msra.mxu0 %v1511
    %1521 = vmatpush.msra.mxu0 %v1510
    %1522 = vmatpush.msra.mxu0 %v1509
    %1523 = vmatpush.msra.mxu0 %v1508
    %1524 = vmatpush.msra.mxu0 %v1507
    %1525 = vmatpush.msra.mxu0 %v1506
    %1526 = vmatpush.msra.mxu0 %v1505
    %1527 = vmatpush.msra.mxu0 %v1504
    %1528 = vmatpush.msra.mxu0 %v1503
    %1529 = vmatpush.msra.mxu0 %v1502
    %1530 = vmatpush.msra.mxu0 %v1501
    %1531 = vmatpush.msra.mxu0 %v1500
    %1532 = vmatpush.msra.mxu0 %v1499
    %1533 = vmatmul.f32.gmra.mxu0 %v1497
    %v1534 = vpop.f32.mrf.mxu0
    %v1535 = vadd.f32 %v1516, %v1534
    %1536 = vmatmul.f32.gmra.mxu0 %v1498
    %v1537 = vpop.f32.mrf.mxu0
    %v1538 = vadd.f32 %v1516, %v1537
    %1539 = vdwg.mxu0
    %v1540 = vadd.f32 %v1535, %v1444
    %v1541 = vadd.f32 %v1538, %v1445
    %v1542 = vld [vmem:[#allocation10 + $0x3c9] sm:$0x1]
    %v1543 = vld [vmem:[#allocation10 + $0x3ca] sm:$0x1]
    %v1544 = vsel %vm155, %v1540, 0.0
    %1545 = vadd.xlane.f32.xlu0 %v1544
    %v1546 = vpop.xlane.xlu0 %1545
    %v1547 = vsel %vm155, %v1541, 0.0
    %1548 = vadd.xlane.f32.xlu0 %v1547
    %v1549 = vpop.xlane.xlu0 %1548
    %v1550 = vmul.f32 %v1546, %v168
    %v1551 = vmul.f32 %v1549, %v168
    %v1552 = vsub.f32 %v1540, %v1550
    %v1553 = vsub.f32 %v1541, %v1551
    %v1554 = vmul.f32 %v1552, %v1552
    %v1555 = vmul.f32 %v1553, %v1553
    %v1556 = vsel %vm155, %v1554, 0.0
    %1557 = vadd.xlane.f32.xlu0 %v1556
    %v1558 = vpop.xlane.xlu0 %1557
    %v1559 = vsel %vm155, %v1555, 0.0
    %1560 = vadd.xlane.f32.xlu0 %v1559
    %v1561 = vpop.xlane.xlu0 %1560
    %v1562 = vmul.f32 %v1558, %v168
    %v1563 = vmul.f32 %v1561, %v168
    %v1564 = vadd.f32 %v1562, 1e-12
    %v1565 = vadd.f32 %v1563, 1e-12
    %v1566 = vrsqrt.pop %v1564
    %v1567 = vmul.f32 %v1566, %v1564
    %v1568 = vmul.f32 %v1567, %v1566
    %v1569 = vmul.f32 0.5, %v1568
    %v1570 = vsub.f32 1.5, %v1569
    %v1571 = vmul.f32 %v1566, %v1570
    %vm1572 = vweird.f32 %v1564
    %vm1573 = vweird.f32 %v1566
    %vm1574 = vmor %vm1572, %vm1573
    %v1575 = vsel %vm1574, %v1566, %v1571
    %v1576 = vrsqrt.pop %v1565
    %v1577 = vmul.f32 %v1576, %v1565
    %v1578 = vmul.f32 %v1577, %v1576
    %v1579 = vmul.f32 0.5, %v1578
    %v1580 = vsub.f32 1.5, %v1579
    %v1581 = vmul.f32 %v1576, %v1580
    %vm1582 = vweird.f32 %v1565
    %vm1583 = vweird.f32 %v1576
    %vm1584 = vmor %vm1582, %vm1583
    %v1585 = vsel %vm1584, %v1576, %v1581
    %v1586 = vmul.f32 %v1552, %v1575
    %v1587 = vmul.f32 %v1553, %v1585
    %v1588 = vperm.slane %v1542, 0
    %v1589 = vmul.f32 %v1586, %v1588
    %v1590 = vmul.f32 %v1587, %v1588
    %v1591 = vperm.slane %v1543, 0
    %v1592 = vadd.f32 %v1589, %v1591
    %v1593 = vadd.f32 %v1590, %v1591
    %1594 = vst.msk [vmem:[#allocation4] sm:$0x1] %vm59, %v1592
    %1595 = vst.msk [vmem:[#allocation4 + $0x1] sm:$0x1] %vm59, %v1593
    %v1596 = vld [vmem:[#allocation4] sm:$0x3]
    %v1597 = vld [vmem:[#allocation10 + $0x388] sm:$0xff]
    %v1598 = vld [vmem:[#allocation10 + $0x390] sm:$0xff]
    %v1599 = vld [vmem:[#allocation10 + $0x398] sm:$0xff]
    %v1600 = vld [vmem:[#allocation10 + $0x3a0] sm:$0xff]
    %v1601 = vld [vmem:[%s2] sm:$0x3]
    %v1602 = vld [vmem:[#allocation10 + $0x3a8] sm:$0x7f]
    %vm1603 = vcmask 56320
    %v1605 = vsel %vm1603, %v1601, 0
    %vm1607 = vcmask 1046528
    %v1609 = vsel %vm1607, %v1602, 0
    %1611 = vmatpush.msra.mxu0 0.0
    %1612 = vmatpush.msra.mxu0 0.0
    %1613 = vmatpush.msra.mxu0 0.0
    %1614 = vmatpush.msra.mxu0 0.0
    %1615 = vmatpush.msra.mxu0 0.0
    %1616 = vmatpush.msra.mxu0 0.0
    %1617 = vmatpush.msra.mxu0 0.0
    %1618 = vmatpush.msra.mxu0 0.0
    %1619 = vmatpush.msra.mxu0 0.0
    %1620 = vmatpush.msra.mxu0 0.0
    %1621 = vmatpush.msra.mxu0 0.0
    %1622 = vmatpush.msra.mxu0 0.0
    %1623 = vmatpush.msra.mxu0 0.0
    %1624 = vmatpush.msra.mxu0 0.0
    %1625 = vmatpush.msra.mxu0 0.0
    %1626 = vmatpush.msra.mxu0 %v1609
    %1627 = vmatmul.f32.gmra.mxu0 %v1605
    %v1628 = vpop.f32.mrf.mxu0
    %v1629 = vadd.f32 0.0, %v1628
    %1630 = vdwg.mxu0
    %v1632 = vsel %vm155, %v1596, 0
    %1634 = vmatpush.msra.mxu0 0.0
    %1635 = vmatpush.msra.mxu0 0.0
    %1636 = vmatpush.msra.mxu0 0.0
    %1637 = vmatpush.msra.mxu0 0.0
    %1638 = vmatpush.msra.mxu0 0.0
    %1639 = vmatpush.msra.mxu0 0.0
    %1640 = vmatpush.msra.mxu0 0.0
    %1641 = vmatpush.msra.mxu0 0.0
    %1642 = vmatpush.msra.mxu0 0.0
    %1643 = vmatpush.msra.mxu0 0.0
    %1644 = vmatpush.msra.mxu0 0.0
    %1645 = vmatpush.msra.mxu0 0.0
    %1646 = vmatpush.msra.mxu0 %v1600
    %1647 = vmatpush.msra.mxu0 %v1599
    %1648 = vmatpush.msra.mxu0 %v1598
    %1649 = vmatpush.msra.mxu0 %v1597
    %1650 = vmatmul.f32.gmra.mxu0 %v1632
    %v1651 = vpop.f32.mrf.mxu0
    %v1652 = vadd.f32 %v1629, %v1651
    %1653 = vdwg.mxu0
    %v1654 = vld [vmem:[#allocation10 + $0x3cb] sm:$0x1]
    %v1655 = vperm.slane %v1654, 0
    %v1656 = vadd.f32 %v1652, %v1655
    %vm1657 = vcmask 17408
    %1658 = vst.msk [vmem:[#allocation12] sm:$0x3] %vm1657, %v1656
    // Predicated region
    $region22: #{bert_multi_regressor.1} parent=1 // pred_check
      _
    $region23: #{bert_multi_regressor.1} parent=1 // pred_check_branch
      %1660 = sbr.rel (0) target = $region25
    $region24: #{bert_multi_regressor.1} parent=1 // pred_region
      %1662 = vsyncadd [#allocation9], 0
      %s1664 = sshll.u32 [#allocation12], 4
      %s1665 = int_to_ptr.vmem [resolvable:$true] %s1664
      %s1666 = sshll.u32 %s4, 4
      %s1667 = int_to_ptr.hbm [resolvable:$true] %s1666
      %1669 = dma.vmem_to_hbm [thread:$0]  %s1665, 32, %s1667, [#allocation9]
    $region25: #{bert_multi_regressor.1} parent=1 // pred_fallthru
      _
    // Predicated region
    $region26: #{bert_multi_regressor.1} parent=1 // pred_check
      _
    $region27: #{bert_multi_regressor.1} parent=1 // pred_check_branch
      %1671 = sbr.rel (0) target = $region29
    $region28: #{bert_multi_regressor.1} parent=1 // pred_region
      %1673 = dma.done [#allocation9], 32
    $region29: #{bert_multi_regressor.1} parent=1 // pred_fallthru
      _
    %1674 = vsyncpa [#allocation8], 1
    %1675 = vsyncpa [#allocation11], 1
    %1676 = vsyncpa [#allocation9], 1

</llo_original>
